<compile_context>
chip_gen: v6e
topology: v6e:2x2x1
jax: 0.10.0
libtpu: 0.0.40
codegen_flags: <defaults>
</compile_context>

<pallas_src>
import functools
import math

import jax
import jax.numpy as jnp
from jax import lax
from jax.experimental import pallas as pl
from jax.experimental.pallas import tpu as pltpu


# ---------------------------------------------------------------- helpers ----
def _layernorm(x, g, b, eps=1e-5):
    mu = jnp.mean(x, axis=-1, keepdims=True)
    var = jnp.mean((x - mu) ** 2, axis=-1, keepdims=True)
    return (x - mu) * lax.rsqrt(var + eps) * g + b


def _gelu_exact(x):
    # nn.GELU() default = exact erf formulation (tanh approx would move work to
    # the EUP but deviates from the PyTorch reference, so it is not used).
    return 0.5 * x * (1.0 + lax.erf(x * (1.0 / math.sqrt(2.0))))


def _ceil_to(a, m):
    return (a + m - 1) // m * m


# ----------------------------------------------------------------- kernel ----
def encoder_kernel(H, D, N_valid, TQ,
                   x_ref, ln1_g_ref, ln1_b_ref,
                   wqkv_ref, bqkv_ref, wo_ref, bo_ref,
                   ln2_g_ref, ln2_b_ref,
                   wi_ref, bi_ref, wout_ref, bout_ref,
                   o_ref):
    dh = D // H
    scale = 1.0 / math.sqrt(dh)
    Np = x_ref.shape[1]                              # padded sequence length (static)

    xf = x_ref[0].astype(jnp.float32)                # (Np, D) f32 residual path

    # ---- LN1 + fused QKV over the full (padded) sequence --------------------
    ln1 = _layernorm(xf, ln1_g_ref[0], ln1_b_ref[0])
    qkv = jnp.dot(ln1.astype(jnp.bfloat16), wqkv_ref[...],
                  preferred_element_type=jnp.float32) + bqkv_ref[0]      # (Np, 3D) f32

    # ---- query-row tile handled by this grid step ----------------------------
    if TQ == Np:                                     # single tile: no slicing needed
        xq, qrow = xf, qkv
    else:
        q_start = pl.multiple_of(pl.program_id(1) * TQ, TQ)
        xq = lax.dynamic_slice_in_dim(xf, q_start, TQ, axis=0)           # (TQ, D)
        qrow = lax.dynamic_slice_in_dim(qkv, q_start, TQ, axis=0)        # (TQ, 3D)

    # ---- batched multi-head attention ----------------------------------------
    # Head-major layout produced once (single relayout), 1/sqrt(dh) folded into q.
    q = (qrow[:, 0:D] * scale).reshape(TQ, H, dh).transpose(1, 0, 2).astype(jnp.bfloat16)
    k = qkv[:, D:2 * D].reshape(Np, H, dh).transpose(1, 0, 2).astype(jnp.bfloat16)
    v = qkv[:, 2 * D:3 * D].reshape(Np, H, dh).transpose(1, 0, 2).astype(jnp.bfloat16)

    s = jnp.einsum("hqd,hkd->hqk", q, k,
                   preferred_element_type=jnp.float32)                   # (H, TQ, Np)
    if N_valid != Np:                                # mask padded keys (static check)
        key_ids = lax.broadcasted_iota(jnp.int32, (1, 1, Np), 2)
        s = jnp.where(key_ids < N_valid, s, -1e30)

    m = jnp.max(s, axis=-1, keepdims=True)
    p = jnp.exp(s - m)
    l = jnp.sum(p, axis=-1, keepdims=True)                               # (H, TQ, 1)
    oh = jnp.einsum("hqk,hkd->hqd", p.astype(jnp.bfloat16), v,
                    preferred_element_type=jnp.float32)                  # (H, TQ, dh)
    oh = oh * pl.reciprocal(l, approx=True)          # deferred softmax normalization
    attn = oh.transpose(1, 0, 2).reshape(TQ, D)                          # (TQ, D)

    # Single K=D output projection (full MXU contraction depth, one result drain).
    msa = jnp.dot(attn.astype(jnp.bfloat16), wo_ref[...],
                  preferred_element_type=jnp.float32) + bo_ref[0]
    # TODO(synk): attention / hidden dropout omitted (identity at inference).

    res1 = msa + xq

    # ---- MLP ------------------------------------------------------------------
    # TODO(synk): at ViT-L-scale `inner` on v7x, K-tile this over `inner`
    # (stream Wi column / Wout row tiles, e.g. via pltpu.emit_pipeline).
    ln2 = _layernorm(res1, ln2_g_ref[0], ln2_b_ref[0])
    inter = jnp.dot(ln2.astype(jnp.bfloat16), wi_ref[...],
                    preferred_element_type=jnp.float32) + bi_ref[0]
    act = _gelu_exact(inter)                         # exact erf, matches nn.GELU()
    out = jnp.dot(act.astype(jnp.bfloat16), wout_ref[...],
                  preferred_element_type=jnp.float32) + bout_ref[0]
    o_ref[0] = (out + res1).astype(o_ref.dtype)


# ---------------------------------------------------- one-time weight prep ----
def prepare_encoder_params(p):
    """Fuse / reshape / downcast weights ONCE at model-load time (not per call)."""
    # TODO(synk): optionally store wqkv/wi/wout as fp8 (v7x) or int8 (v5e/v6e)
    # with per-channel scales to halve weight VMEM/HBM traffic again.
    return {
        "ln1_g": p["ln1_g"].astype(jnp.float32),
        "ln1_b": p["ln1_b"].astype(jnp.float32),
        "wqkv": jnp.concatenate([p["wq"], p["wk"], p["wv"]], axis=1).astype(jnp.bfloat16),
        "bqkv": jnp.concatenate([p["bq"], p["bk"], p["bv"]], axis=1).astype(jnp.float32),
        "wo": p["wo"].astype(jnp.bfloat16),
        "bo": p["bo"].astype(jnp.float32),
        "ln2_g": p["ln2_g"].astype(jnp.float32),
        "ln2_b": p["ln2_b"].astype(jnp.float32),
        "wi": p["wi"].astype(jnp.bfloat16),
        "bi": p["bi"].astype(jnp.float32),
        "wout": p["wout"].astype(jnp.bfloat16),
        "bout": p["bout"].astype(jnp.float32),
    }


# ---------------------------------------------------------------- wrapper ----
def encoder_forward(x, prep, H, *, q_block=256):
    B, N, D = x.shape
    inner = prep["wi"].shape[1]

    # Pad N to a sublane multiple (8); if tiling queries, pad to the tile size.
    Np = _ceil_to(N, 8)
    if Np > q_block:
        TQ = _ceil_to(q_block, 8)
        Np = _ceil_to(Np, TQ)
    else:
        TQ = Np
    num_q = Np // TQ
    x_in = jnp.pad(x, ((0, 0), (0, Np - N), (0, 0))) if Np != N else x

    # Constant-index parameter blocks: single-buffered (their block index never
    # changes), halving their resident VMEM — matters under v7x's 64 MiB budget.
    def const(shape):
        return pl.BlockSpec(shape, lambda b, q: (0, 0), pipeline_mode=pl.Buffered(1))

    in_specs = [
        pl.BlockSpec((1, Np, D), lambda b, q: (b, 0, 0)),   # x (full seq, K/V source)
        const((1, D)), const((1, D)),                       # LN1 gamma / beta
        const((D, 3 * D)), const((1, 3 * D)),               # fused Wqkv, bqkv
        const((D, D)), const((1, D)),                       # Wo, bo
        const((1, D)), const((1, D)),                       # LN2 gamma / beta
        const((D, inner)), const((1, inner)),               # Wi, bi
        const((inner, D)), const((1, D)),                   # Wout, bout
    ]

    # Generation-aware VMEM budget: ~7/8 of physical, capped at 112 MiB.
    try:
        vmem_cap = int(pltpu.get_tpu_info().vmem_capacity_bytes)
    except Exception:
        vmem_cap = 128 * 1024 * 1024
    vmem_limit = min(vmem_cap * 7 // 8, 112 * 1024 * 1024)

    out = pl.pallas_call(
        functools.partial(encoder_kernel, H, D, N, TQ),
        out_shape=jax.ShapeDtypeStruct((B, Np, D), x.dtype),
        grid=(B, num_q),
        in_specs=in_specs,
        out_specs=pl.BlockSpec((1, TQ, D), lambda b, q: (b, q, 0)),
        compiler_params=pltpu.CompilerParams(
            dimension_semantics=("parallel", "parallel"),
            vmem_limit_bytes=vmem_limit),
    )(x_in, prep["ln1_g"], prep["ln1_b"],
      prep["wqkv"], prep["bqkv"], prep["wo"], prep["bo"],
      prep["ln2_g"], prep["ln2_b"],
      prep["wi"], prep["bi"], prep["wout"], prep["bout"])

    return out[:, :N, :] if Np != N else out


# ------------------------------------------------------- pure-JAX reference ----
def encoder_reference(x, p, H):
    B, N, D = x.shape
    dh = D // H
    ln1 = _layernorm(x, p["ln1_g"][0], p["ln1_b"][0])
    q = ln1 @ p["wq"] + p["bq"][0]
    k = ln1 @ p["wk"] + p["bk"][0]
    v = ln1 @ p["wv"] + p["bv"][0]
    qh = q.reshape(B, N, H, dh).transpose(0, 2, 1, 3)
    kh = k.reshape(B, N, H, dh).transpose(0, 2, 1, 3)
    vh = v.reshape(B, N, H, dh).transpose(0, 2, 1, 3)
    s = jnp.einsum("bhnd,bhmd->bhnm", qh, kh) / math.sqrt(dh)
    pr = jax.nn.softmax(s, axis=-1)
    attn = jnp.einsum("bhnm,bhmd->bhnd", pr, vh).transpose(0, 2, 1, 3).reshape(B, N, D)
    msa = attn @ p["wo"] + p["bo"][0]
    res1 = msa + x
    ln2 = _layernorm(res1, p["ln2_g"][0], p["ln2_b"][0])
    inter = ln2 @ p["wi"] + p["bi"][0]
    act = _gelu_exact(inter)
    out = act @ p["wout"] + p["bout"][0]
    return out + res1


# ------------------------------------------------------------------- main ----
if __name__ == "__main__":
    D, H, inner = 32, 4, 64              # dropout = 0.0 (identity at inference)

    key = jax.random.PRNGKey(0)
    keys = jax.random.split(key, 16)

    def w(k, shape, s=0.02):
        return (s * jax.random.normal(k, shape)).astype(jnp.float32)

    params = {
        "ln1_g": jnp.ones((1, D), jnp.float32),
        "ln1_b": jnp.zeros((1, D), jnp.float32),
        "wq": w(keys[0], (D, D)), "bq": w(keys[1], (1, D)),
        "wk": w(keys[2], (D, D)), "bk": w(keys[3], (1, D)),
        "wv": w(keys[4], (D, D)), "bv": w(keys[5], (1, D)),
        "wo": w(keys[6], (D, D)), "bo": w(keys[7], (1, D)),
        "ln2_g": jnp.ones((1, D), jnp.float32),
        "ln2_b": jnp.zeros((1, D), jnp.float32),
        "wi": w(keys[8], (D, inner)), "bi": w(keys[9], (1, inner)),
        "wout": w(keys[10], (inner, D)), "bout": w(keys[11], (1, D)),
    }
    prep = prepare_encoder_params(params)          # one-time, model-load

    test_cases = [
        ((2, 8), {}),                 # aligned N, single query tile
        ((2, 10), {}),                # N % 8 != 0 -> pad + key-mask path
        ((2, 16), {"q_block": 8}),    # multiple query tiles (sequence grid axis)
    ]
    for i, ((B, N), kw) in enumerate(test_cases):
        x = jax.random.normal(keys[12 + i], (B, N, D), jnp.float32)
        y_kernel = jax.block_until_ready(encoder_forward(x, prep, H, **kw))
        y_ref = encoder_reference(x, params, H)
        assert y_kernel.shape == (B, N, D)
        err = float(jnp.max(jnp.abs(y_kernel - y_ref)))
        # bf16 MXU operands + approx reciprocal -> compare against f32 reference
        # with a correspondingly looser tolerance.
        assert jnp.allclose(y_kernel, y_ref, rtol=2e-2, atol=2e-2), err

    print("KERNEL_OK")
</pallas_src>

<mosaic_0001>
module attributes {stable_mosaic.version = 11 : i64} {
  func.func @encoder_kernel(%arg0: i32, %arg1: i32, %arg2: memref<1x8x32xf32, #tpu.memory_space<vmem>>, %arg3: memref<1x32xf32, #tpu.memory_space<vmem>>, %arg4: memref<1x32xf32, #tpu.memory_space<vmem>>, %arg5: memref<32x96xbf16, #tpu.memory_space<vmem>>, %arg6: memref<1x96xf32, #tpu.memory_space<vmem>>, %arg7: memref<32x32xbf16, #tpu.memory_space<vmem>>, %arg8: memref<1x32xf32, #tpu.memory_space<vmem>>, %arg9: memref<1x32xf32, #tpu.memory_space<vmem>>, %arg10: memref<1x32xf32, #tpu.memory_space<vmem>>, %arg11: memref<32x64xbf16, #tpu.memory_space<vmem>>, %arg12: memref<1x64xf32, #tpu.memory_space<vmem>>, %arg13: memref<64x32xbf16, #tpu.memory_space<vmem>>, %arg14: memref<1x32xf32, #tpu.memory_space<vmem>>, %arg15: memref<1x8x32xf32, #tpu.memory_space<vmem>>) attributes {dimension_semantics = [#tpu.dimension_semantics<parallel>, #tpu.dimension_semantics<parallel>], iteration_bounds = array<i64: 2, 1>, scalar_prefetch = 0 : i64, scratch_operands = 0 : i64, tpu.core_type = #tpu.core_type<tc>, window_params = [{transform_indices = @transform_0, window_bounds = array<i64: 1, 8, 32>}, {pipeline_mode = #tpu.pipeline_mode<synchronous>, transform_indices = @transform_1, window_bounds = array<i64: 1, 32>}, {pipeline_mode = #tpu.pipeline_mode<synchronous>, transform_indices = @transform_2, window_bounds = array<i64: 1, 32>}, {pipeline_mode = #tpu.pipeline_mode<synchronous>, transform_indices = @transform_3, window_bounds = array<i64: 32, 96>}, {pipeline_mode = #tpu.pipeline_mode<synchronous>, transform_indices = @transform_4, window_bounds = array<i64: 1, 96>}, {pipeline_mode = #tpu.pipeline_mode<synchronous>, transform_indices = @transform_5, window_bounds = array<i64: 32, 32>}, {pipeline_mode = #tpu.pipeline_mode<synchronous>, transform_indices = @transform_6, window_bounds = array<i64: 1, 32>}, {pipeline_mode = #tpu.pipeline_mode<synchronous>, transform_indices = @transform_7, window_bounds = array<i64: 1, 32>}, {pipeline_mode = #tpu.pipeline_mode<synchronous>, transform_indices = @transform_8, window_bounds = array<i64: 1, 32>}, {pipeline_mode = #tpu.pipeline_mode<synchronous>, transform_indices = @transform_9, window_bounds = array<i64: 32, 64>}, {pipeline_mode = #tpu.pipeline_mode<synchronous>, transform_indices = @transform_10, window_bounds = array<i64: 1, 64>}, {pipeline_mode = #tpu.pipeline_mode<synchronous>, transform_indices = @transform_11, window_bounds = array<i64: 64, 32>}, {pipeline_mode = #tpu.pipeline_mode<synchronous>, transform_indices = @transform_12, window_bounds = array<i64: 1, 32>}, {transform_indices = @transform_13, window_bounds = array<i64: 1, 8, 32>}]} {
    %c0 = arith.constant 0 : index
    %c0_0 = arith.constant 0 : index
    %c0_1 = arith.constant 0 : index
    %0 = vector.load %arg2[%c0, %c0_0, %c0_1] : memref<1x8x32xf32, #tpu.memory_space<vmem>>, vector<1x8x32xf32>
    %1 = vector.shape_cast %0 : vector<1x8x32xf32> to vector<8x32xf32>
    %c0_2 = arith.constant 0 : index
    %c0_3 = arith.constant 0 : index
    %2 = vector.load %arg3[%c0_2, %c0_3] : memref<1x32xf32, #tpu.memory_space<vmem>>, vector<1x32xf32>
    %3 = vector.shape_cast %2 : vector<1x32xf32> to vector<32xf32>
    %c0_4 = arith.constant 0 : index
    %c0_5 = arith.constant 0 : index
    %4 = vector.load %arg4[%c0_4, %c0_5] : memref<1x32xf32, #tpu.memory_space<vmem>>, vector<1x32xf32>
    %5 = vector.shape_cast %4 : vector<1x32xf32> to vector<32xf32>
    %cst = arith.constant dense<0.000000e+00> : vector<8xf32>
    %6 = vector.multi_reduction <add>, %1, %cst [1] : vector<8x32xf32> to vector<8xf32>
    %7 = vector.shape_cast %6 : vector<8xf32> to vector<8x1xf32>
    %cst_6 = arith.constant 3.200000e+01 : f32
    %8 = vector.broadcast %cst_6 : f32 to vector<8x1xf32>
    %9 = arith.divf %7, %8 : vector<8x1xf32>
    %10 = vector.broadcast %9 : vector<8x1xf32> to vector<8x32xf32>
    %11 = arith.subf %1, %10 : vector<8x32xf32>
    %12 = arith.mulf %11, %11 : vector<8x32xf32>
    %cst_7 = arith.constant dense<0.000000e+00> : vector<8xf32>
    %13 = vector.multi_reduction <add>, %12, %cst_7 [1] : vector<8x32xf32> to vector<8xf32>
    %14 = vector.shape_cast %13 : vector<8xf32> to vector<8x1xf32>
    %cst_8 = arith.constant 3.200000e+01 : f32
    %15 = vector.broadcast %cst_8 : f32 to vector<8x1xf32>
    %16 = arith.divf %14, %15 : vector<8x1xf32>
    %17 = vector.broadcast %9 : vector<8x1xf32> to vector<8x32xf32>
    %18 = arith.subf %1, %17 : vector<8x32xf32>
    %cst_9 = arith.constant 9.99999974E-6 : f32
    %19 = vector.broadcast %cst_9 : f32 to vector<8x1xf32>
    %20 = arith.addf %16, %19 : vector<8x1xf32>
    %21 = math.rsqrt %20 : vector<8x1xf32>
    %22 = vector.broadcast %21 : vector<8x1xf32> to vector<8x32xf32>
    %23 = arith.mulf %18, %22 : vector<8x32xf32>
    %24 = vector.shape_cast %3 : vector<32xf32> to vector<1x32xf32>
    %25 = vector.broadcast %24 : vector<1x32xf32> to vector<8x32xf32>
    %26 = arith.mulf %23, %25 : vector<8x32xf32>
    %27 = vector.shape_cast %5 : vector<32xf32> to vector<1x32xf32>
    %28 = vector.broadcast %27 : vector<1x32xf32> to vector<8x32xf32>
    %29 = arith.addf %26, %28 : vector<8x32xf32>
    %30 = arith.truncf %29 : vector<8x32xf32> to vector<8x32xbf16>
    %c0_10 = arith.constant 0 : index
    %c0_11 = arith.constant 0 : index
    %31 = vector.load %arg5[%c0_10, %c0_11] : memref<32x96xbf16, #tpu.memory_space<vmem>>, vector<32x96xbf16>
    %cst_12 = arith.constant dense<0.000000e+00> : vector<8x96xf32>
    %32 = tpu.matmul %30, %31, %cst_12 {dimension_numbers = #tpu.dot_dimension_numbers<[1], [0], [0], [1], [0, 0, 1, 1], [], []>} : vector<8x32xbf16>, vector<32x96xbf16>, vector<8x96xf32> -> vector<8x96xf32>
    %c0_13 = arith.constant 0 : index
    %c0_14 = arith.constant 0 : index
    %33 = vector.load %arg6[%c0_13, %c0_14] : memref<1x96xf32, #tpu.memory_space<vmem>>, vector<1x96xf32>
    %34 = vector.shape_cast %33 : vector<1x96xf32> to vector<96xf32>
    %35 = vector.shape_cast %34 : vector<96xf32> to vector<1x96xf32>
    %36 = vector.broadcast %35 : vector<1x96xf32> to vector<8x96xf32>
    %37 = arith.addf %32, %36 : vector<8x96xf32>
    %38 = vector.extract_strided_slice %37 {offsets = [0, 0], sizes = [8, 32], strides = [1, 1]} : vector<8x96xf32> to vector<8x32xf32>
    %cst_15 = arith.constant 0.353553385 : f32
    %39 = vector.broadcast %cst_15 : f32 to vector<8x32xf32>
    %40 = arith.mulf %38, %39 : vector<8x32xf32>
    %41 = vector.shape_cast %40 : vector<8x32xf32> to vector<8x4x8xf32>
    %42 = tpu.transpose %41, [1, 0, 2] : vector<8x4x8xf32> -> vector<4x8x8xf32>
    %43 = arith.truncf %42 : vector<4x8x8xf32> to vector<4x8x8xbf16>
    %44 = vector.extract_strided_slice %37 {offsets = [0, 32], sizes = [8, 32], strides = [1, 1]} : vector<8x96xf32> to vector<8x32xf32>
    %45 = vector.shape_cast %44 : vector<8x32xf32> to vector<8x4x8xf32>
    %46 = tpu.transpose %45, [1, 0, 2] : vector<8x4x8xf32> -> vector<4x8x8xf32>
    %47 = arith.truncf %46 : vector<4x8x8xf32> to vector<4x8x8xbf16>
    %48 = vector.extract_strided_slice %37 {offsets = [0, 64], sizes = [8, 32], strides = [1, 1]} : vector<8x96xf32> to vector<8x32xf32>
    %49 = vector.shape_cast %48 : vector<8x32xf32> to vector<8x4x8xf32>
    %50 = tpu.transpose %49, [1, 0, 2] : vector<8x4x8xf32> -> vector<4x8x8xf32>
    %51 = arith.truncf %50 : vector<4x8x8xf32> to vector<4x8x8xbf16>
    "tpu.trace_start"() <{level = 10 : i32, message = "hqd,hkd->hqk"}> : () -> ()
    %cst_16 = arith.constant dense<0.000000e+00> : vector<4x8x8xf32>
    %52 = tpu.matmul %43, %47, %cst_16 {dimension_numbers = #tpu.dot_dimension_numbers<[2], [2], [1], [1], [0, 0, 0, 1, 1, 1], [0], [0]>} : vector<4x8x8xbf16>, vector<4x8x8xbf16>, vector<4x8x8xf32> -> vector<4x8x8xf32>
    "tpu.trace_stop"() : () -> ()
    %cst_17 = arith.constant dense<0xFF800000> : vector<4x8xf32>
    %53 = vector.multi_reduction <maximumf>, %52, %cst_17 [2] : vector<4x8x8xf32> to vector<4x8xf32>
    %54 = vector.shape_cast %53 : vector<4x8xf32> to vector<4x8x1xf32>
    %55 = vector.broadcast %54 : vector<4x8x1xf32> to vector<4x8x8xf32>
    %56 = arith.subf %52, %55 : vector<4x8x8xf32>
    %57 = math.exp %56 : vector<4x8x8xf32>
    %cst_18 = arith.constant dense<0.000000e+00> : vector<4x8xf32>
    %58 = vector.multi_reduction <add>, %57, %cst_18 [2] : vector<4x8x8xf32> to vector<4x8xf32>
    %59 = vector.shape_cast %58 : vector<4x8xf32> to vector<4x8x1xf32>
    %60 = arith.truncf %57 : vector<4x8x8xf32> to vector<4x8x8xbf16>
    "tpu.trace_start"() <{level = 10 : i32, message = "hqk,hkd->hqd"}> : () -> ()
    %cst_19 = arith.constant dense<0.000000e+00> : vector<4x8x8xf32>
    %61 = tpu.matmul %60, %51, %cst_19 {dimension_numbers = #tpu.dot_dimension_numbers<[2], [1], [1], [2], [0, 0, 0, 1, 1, 2], [0], [0]>} : vector<4x8x8xbf16>, vector<4x8x8xbf16>, vector<4x8x8xf32> -> vector<4x8x8xf32>
    "tpu.trace_stop"() : () -> ()
    %62 = tpu.reciprocal %59 {approx = true} : vector<4x8x1xf32> -> vector<4x8x1xf32>
    %63 = vector.broadcast %62 : vector<4x8x1xf32> to vector<4x8x8xf32>
    %64 = arith.mulf %61, %63 : vector<4x8x8xf32>
    %65 = tpu.transpose %64, [1, 0, 2] : vector<4x8x8xf32> -> vector<8x4x8xf32>
    %66 = vector.shape_cast %65 : vector<8x4x8xf32> to vector<8x32xf32>
    %67 = arith.truncf %66 : vector<8x32xf32> to vector<8x32xbf16>
    %c0_20 = arith.constant 0 : index
    %c0_21 = arith.constant 0 : index
    %68 = vector.load %arg7[%c0_20, %c0_21] : memref<32x32xbf16, #tpu.memory_space<vmem>>, vector<32x32xbf16>
    %cst_22 = arith.constant dense<0.000000e+00> : vector<8x32xf32>
    %69 = tpu.matmul %67, %68, %cst_22 {dimension_numbers = #tpu.dot_dimension_numbers<[1], [0], [0], [1], [0, 0, 1, 1], [], []>} : vector<8x32xbf16>, vector<32x32xbf16>, vector<8x32xf32> -> vector<8x32xf32>
    %c0_23 = arith.constant 0 : index
    %c0_24 = arith.constant 0 : index
    %70 = vector.load %arg8[%c0_23, %c0_24] : memref<1x32xf32, #tpu.memory_space<vmem>>, vector<1x32xf32>
    %71 = vector.shape_cast %70 : vector<1x32xf32> to vector<32xf32>
    %72 = vector.shape_cast %71 : vector<32xf32> to vector<1x32xf32>
    %73 = vector.broadcast %72 : vector<1x32xf32> to vector<8x32xf32>
    %74 = arith.addf %69, %73 : vector<8x32xf32>
    %75 = arith.addf %74, %1 : vector<8x32xf32>
    %c0_25 = arith.constant 0 : index
    %c0_26 = arith.constant 0 : index
    %76 = vector.load %arg9[%c0_25, %c0_26] : memref<1x32xf32, #tpu.memory_space<vmem>>, vector<1x32xf32>
    %77 = vector.shape_cast %76 : vector<1x32xf32> to vector<32xf32>
    %c0_27 = arith.constant 0 : index
    %c0_28 = arith.constant 0 : index
    %78 = vector.load %arg10[%c0_27, %c0_28] : memref<1x32xf32, #tpu.memory_space<vmem>>, vector<1x32xf32>
    %79 = vector.shape_cast %78 : vector<1x32xf32> to vector<32xf32>
    %cst_29 = arith.constant dense<0.000000e+00> : vector<8xf32>
    %80 = vector.multi_reduction <add>, %75, %cst_29 [1] : vector<8x32xf32> to vector<8xf32>
    %81 = vector.shape_cast %80 : vector<8xf32> to vector<8x1xf32>
    %cst_30 = arith.constant 3.200000e+01 : f32
    %82 = vector.broadcast %cst_30 : f32 to vector<8x1xf32>
    %83 = arith.divf %81, %82 : vector<8x1xf32>
    %84 = vector.broadcast %83 : vector<8x1xf32> to vector<8x32xf32>
    %85 = arith.subf %75, %84 : vector<8x32xf32>
    %86 = arith.mulf %85, %85 : vector<8x32xf32>
    %cst_31 = arith.constant dense<0.000000e+00> : vector<8xf32>
    %87 = vector.multi_reduction <add>, %86, %cst_31 [1] : vector<8x32xf32> to vector<8xf32>
    %88 = vector.shape_cast %87 : vector<8xf32> to vector<8x1xf32>
    %cst_32 = arith.constant 3.200000e+01 : f32
    %89 = vector.broadcast %cst_32 : f32 to vector<8x1xf32>
    %90 = arith.divf %88, %89 : vector<8x1xf32>
    %91 = vector.broadcast %83 : vector<8x1xf32> to vector<8x32xf32>
    %92 = arith.subf %75, %91 : vector<8x32xf32>
    %cst_33 = arith.constant 9.99999974E-6 : f32
    %93 = vector.broadcast %cst_33 : f32 to vector<8x1xf32>
    %94 = arith.addf %90, %93 : vector<8x1xf32>
    %95 = math.rsqrt %94 : vector<8x1xf32>
    %96 = vector.broadcast %95 : vector<8x1xf32> to vector<8x32xf32>
    %97 = arith.mulf %92, %96 : vector<8x32xf32>
    %98 = vector.shape_cast %77 : vector<32xf32> to vector<1x32xf32>
    %99 = vector.broadcast %98 : vector<1x32xf32> to vector<8x32xf32>
    %100 = arith.mulf %97, %99 : vector<8x32xf32>
    %101 = vector.shape_cast %79 : vector<32xf32> to vector<1x32xf32>
    %102 = vector.broadcast %101 : vector<1x32xf32> to vector<8x32xf32>
    %103 = arith.addf %100, %102 : vector<8x32xf32>
    %104 = arith.truncf %103 : vector<8x32xf32> to vector<8x32xbf16>
    %c0_34 = arith.constant 0 : index
    %c0_35 = arith.constant 0 : index
    %105 = vector.load %arg11[%c0_34, %c0_35] : memref<32x64xbf16, #tpu.memory_space<vmem>>, vector<32x64xbf16>
    %cst_36 = arith.constant dense<0.000000e+00> : vector<8x64xf32>
    %106 = tpu.matmul %104, %105, %cst_36 {dimension_numbers = #tpu.dot_dimension_numbers<[1], [0], [0], [1], [0, 0, 1, 1], [], []>} : vector<8x32xbf16>, vector<32x64xbf16>, vector<8x64xf32> -> vector<8x64xf32>
    %c0_37 = arith.constant 0 : index
    %c0_38 = arith.constant 0 : index
    %107 = vector.load %arg12[%c0_37, %c0_38] : memref<1x64xf32, #tpu.memory_space<vmem>>, vector<1x64xf32>
    %108 = vector.shape_cast %107 : vector<1x64xf32> to vector<64xf32>
    %109 = vector.shape_cast %108 : vector<64xf32> to vector<1x64xf32>
    %110 = vector.broadcast %109 : vector<1x64xf32> to vector<8x64xf32>
    %111 = arith.addf %106, %110 : vector<8x64xf32>
    %cst_39 = arith.constant 5.000000e-01 : f32
    %112 = vector.broadcast %cst_39 : f32 to vector<8x64xf32>
    %113 = arith.mulf %112, %111 : vector<8x64xf32>
    %cst_40 = arith.constant 0.707106769 : f32
    %114 = vector.broadcast %cst_40 : f32 to vector<8x64xf32>
    %115 = arith.mulf %111, %114 : vector<8x64xf32>
    %116 = math.erf %115 : vector<8x64xf32>
    %cst_41 = arith.constant 1.000000e+00 : f32
    %117 = vector.broadcast %cst_41 : f32 to vector<8x64xf32>
    %118 = arith.addf %117, %116 : vector<8x64xf32>
    %119 = arith.mulf %113, %118 : vector<8x64xf32>
    %120 = arith.truncf %119 : vector<8x64xf32> to vector<8x64xbf16>
    %c0_42 = arith.constant 0 : index
    %c0_43 = arith.constant 0 : index
    %121 = vector.load %arg13[%c0_42, %c0_43] : memref<64x32xbf16, #tpu.memory_space<vmem>>, vector<64x32xbf16>
    %cst_44 = arith.constant dense<0.000000e+00> : vector<8x32xf32>
    %122 = tpu.matmul %120, %121, %cst_44 {dimension_numbers = #tpu.dot_dimension_numbers<[1], [0], [0], [1], [0, 0, 1, 1], [], []>} : vector<8x64xbf16>, vector<64x32xbf16>, vector<8x32xf32> -> vector<8x32xf32>
    %c0_45 = arith.constant 0 : index
    %c0_46 = arith.constant 0 : index
    %123 = vector.load %arg14[%c0_45, %c0_46] : memref<1x32xf32, #tpu.memory_space<vmem>>, vector<1x32xf32>
    %124 = vector.shape_cast %123 : vector<1x32xf32> to vector<32xf32>
    %125 = vector.shape_cast %124 : vector<32xf32> to vector<1x32xf32>
    %126 = vector.broadcast %125 : vector<1x32xf32> to vector<8x32xf32>
    %127 = arith.addf %122, %126 : vector<8x32xf32>
    %128 = arith.addf %127, %75 : vector<8x32xf32>
    %c0_47 = arith.constant 0 : index
    %c0_48 = arith.constant 0 : index
    %c0_49 = arith.constant 0 : index
    %129 = vector.load %arg15[%c0_47, %c0_48, %c0_49] : memref<1x8x32xf32, #tpu.memory_space<vmem>>, vector<1x8x32xf32>
    %130 = vector.shape_cast %129 : vector<1x8x32xf32> to vector<8x32xf32>
    %131 = vector.shape_cast %128 : vector<8x32xf32> to vector<1x8x32xf32>
    tpu.vector_store %arg15[%c0_47, %c0_48, %c0_49], %131 {strides = array<i32>} : memref<1x8x32xf32, #tpu.memory_space<vmem>>, vector<1x8x32xf32>,
    return
  }
  func.func @transform_0(%arg0: i32, %arg1: i32) -> (i32, i32, i32) {
    %c0_i32 = arith.constant 0 : i32
    %c0_i32_0 = arith.constant 0 : i32
    %c0_i32_1 = arith.constant 0 : i32
    return %arg0, %c0_i32, %c0_i32_0 : i32, i32, i32
  }
  func.func @transform_1(%arg0: i32, %arg1: i32) -> (i32, i32) {
    %c0_i32 = arith.constant 0 : i32
    %c0_i32_0 = arith.constant 0 : i32
    %c0_i32_1 = arith.constant 0 : i32
    return %c0_i32, %c0_i32_0 : i32, i32
  }
  func.func @transform_2(%arg0: i32, %arg1: i32) -> (i32, i32) {
    %c0_i32 = arith.constant 0 : i32
    %c0_i32_0 = arith.constant 0 : i32
    %c0_i32_1 = arith.constant 0 : i32
    return %c0_i32, %c0_i32_0 : i32, i32
  }
  func.func @transform_3(%arg0: i32, %arg1: i32) -> (i32, i32) {
    %c0_i32 = arith.constant 0 : i32
    %c0_i32_0 = arith.constant 0 : i32
    %c0_i32_1 = arith.constant 0 : i32
    return %c0_i32, %c0_i32_0 : i32, i32
  }
  func.func @transform_4(%arg0: i32, %arg1: i32) -> (i32, i32) {
    %c0_i32 = arith.constant 0 : i32
    %c0_i32_0 = arith.constant 0 : i32
    %c0_i32_1 = arith.constant 0 : i32
    return %c0_i32, %c0_i32_0 : i32, i32
  }
  func.func @transform_5(%arg0: i32, %arg1: i32) -> (i32, i32) {
    %c0_i32 = arith.constant 0 : i32
    %c0_i32_0 = arith.constant 0 : i32
    %c0_i32_1 = arith.constant 0 : i32
    return %c0_i32, %c0_i32_0 : i32, i32
  }
  func.func @transform_6(%arg0: i32, %arg1: i32) -> (i32, i32) {
    %c0_i32 = arith.constant 0 : i32
    %c0_i32_0 = arith.constant 0 : i32
    %c0_i32_1 = arith.constant 0 : i32
    return %c0_i32, %c0_i32_0 : i32, i32
  }
  func.func @transform_7(%arg0: i32, %arg1: i32) -> (i32, i32) {
    %c0_i32 = arith.constant 0 : i32
    %c0_i32_0 = arith.constant 0 : i32
    %c0_i32_1 = arith.constant 0 : i32
    return %c0_i32, %c0_i32_0 : i32, i32
  }
  func.func @transform_8(%arg0: i32, %arg1: i32) -> (i32, i32) {
    %c0_i32 = arith.constant 0 : i32
    %c0_i32_0 = arith.constant 0 : i32
    %c0_i32_1 = arith.constant 0 : i32
    return %c0_i32, %c0_i32_0 : i32, i32
  }
  func.func @transform_9(%arg0: i32, %arg1: i32) -> (i32, i32) {
    %c0_i32 = arith.constant 0 : i32
    %c0_i32_0 = arith.constant 0 : i32
    %c0_i32_1 = arith.constant 0 : i32
    return %c0_i32, %c0_i32_0 : i32, i32
  }
  func.func @transform_10(%arg0: i32, %arg1: i32) -> (i32, i32) {
    %c0_i32 = arith.constant 0 : i32
    %c0_i32_0 = arith.constant 0 : i32
    %c0_i32_1 = arith.constant 0 : i32
    return %c0_i32, %c0_i32_0 : i32, i32
  }
  func.func @transform_11(%arg0: i32, %arg1: i32) -> (i32, i32) {
    %c0_i32 = arith.constant 0 : i32
    %c0_i32_0 = arith.constant 0 : i32
    %c0_i32_1 = arith.constant 0 : i32
    return %c0_i32, %c0_i32_0 : i32, i32
  }
  func.func @transform_12(%arg0: i32, %arg1: i32) -> (i32, i32) {
    %c0_i32 = arith.constant 0 : i32
    %c0_i32_0 = arith.constant 0 : i32
    %c0_i32_1 = arith.constant 0 : i32
    return %c0_i32, %c0_i32_0 : i32, i32
  }
  func.func @transform_13(%arg0: i32, %arg1: i32) -> (i32, i32, i32) {
    %c0_i32 = arith.constant 0 : i32
    %c0_i32_0 = arith.constant 0 : i32
    return %arg0, %arg1, %c0_i32 : i32, i32, i32
  }
}

</mosaic_0001>

<llo_original>
// kernel: tpu_custom_call.1
$region0: #{tpu_custom_call.1}
  #allocation0 [shape = 'u32[]', space=smem, size = 0x4, offset = 0x4, fixed_abs, tag = 'smem constant byte address 0x4 - core index']
  #allocation1 [shape = 'u32[144,128]{1,0:T(1,128)}', space=vmem, size = 0x12000, scoped, tag = 'internal scratch']
  %s0 = inlined_call_operand.vmem [shape: f32[2,8,32], index: 0, kind: input, shape index: {}]
  %s1 = inlined_call_operand.vmem [shape: f32[1,32], index: 1, kind: input, shape index: {}]
  %s2 = inlined_call_operand.vmem [shape: f32[1,32], index: 2, kind: input, shape index: {}]
  %s3 = inlined_call_operand.vmem [shape: bf16[32,96], index: 3, kind: input, shape index: {}]
  %s4 = inlined_call_operand.vmem [shape: f32[1,96], index: 4, kind: input, shape index: {}]
  %s5 = inlined_call_operand.vmem [shape: bf16[32,32], index: 5, kind: input, shape index: {}]
  %s6 = inlined_call_operand.vmem [shape: f32[1,32], index: 6, kind: input, shape index: {}]
  %s7 = inlined_call_operand.hbm [shape: f32[1,32], index: 7, kind: input, shape index: {}]
  %s8 = inlined_call_operand.hbm [shape: f32[1,32], index: 8, kind: input, shape index: {}]
  %s9 = inlined_call_operand.hbm [shape: bf16[32,64], index: 9, kind: input, shape index: {}]
  %s10 = inlined_call_operand.hbm [shape: f32[1,64], index: 10, kind: input, shape index: {}]
  %s11 = inlined_call_operand.vmem [shape: bf16[64,32], index: 11, kind: input, shape index: {}]
  %s12 = inlined_call_operand.vmem [shape: f32[1,32], index: 12, kind: input, shape index: {}]
  %s13 = inlined_call_operand.hbm [shape: f32[2,8,32], index: 13, kind: output, shape index: {}]
  %s14 = sld [smem:[#allocation0]]
  $region101: #{tpu_custom_call.1} parent=0
    _
  %s16 = ssub.s32 1, %s14
  %s17 = scalar_select 0, %s16, %s14
  $region1: #{tpu_custom_call.1} parent=0
    #allocation2 [shape = 'u8[512]{0}', space=vmem, size = 0x400, scoped, tag = 'input window, operand 7, single buffered']
    #allocation3 [shape = 's32[2]{0}', space=sflag, size = 0x8, scoped, tag = 'scoped memory for tpu_custom_call.1']
    #allocation4 [shape = 's32[2]{0}', space=sflag, size = 0x8, scoped, tag = 'scoped memory for tpu_custom_call.1']
    #allocation5 [shape = 'u8[512]{0}', space=vmem, size = 0x400, scoped, tag = 'input window, operand 8, single buffered']
    #allocation6 [shape = 's32[1]{0}', space=sflag, size = 0x4, scoped, tag = 'scoped memory for tpu_custom_call.1']
    #allocation7 [shape = 'u8[8192]{0}', space=vmem, size = 0x2000, scoped, tag = 'input window, operand 9, single buffered']
    #allocation8 [shape = 'u8[512]{0}', space=vmem, size = 0x400, scoped, tag = 'input window, operand 10, single buffered']
    #allocation9 [shape = 's32[1]{0}', space=sflag, size = 0x4, scoped, tag = 'scoped memory for tpu_custom_call.1']
    #allocation10 [shape = 'u8[8192]{0}', space=vmem, size = 0x2000, scoped, tag = 'output window, operand 0']
    %18 = vsyncpa [#allocation3], 0
    %19 = vsyncpa [#allocation6], 0
    %20 = vsyncpa [#allocation9], 0
    %21 = vsyncpa [#allocation4], 0
    %s22 = scalar_lea.sflag [#allocation4], 1
    %23 = vsyncpa %s22, 0
    loop: start=0, step=1, limit=4
    $region2: #{tpu_custom_call.1} parent=1 // loop_pre_header
      _
    $region3: #{tpu_custom_call.1} parent=1 // loop_header
      %s25 = sphi 0, %s29
      %p26 = scmp.ge.s32.totalorder %s25, 4
      %s32 = sphi 0, %s44
      %s33 = sphi 0, %s40
      %s34 = sphi 0, %s32
      %s35 = sphi 0, %s33
      %s36 = sphi 0, %s34
      %s37 = sphi 0, %s35
      %s47 = sphi 0, %s49
      %s50 = sphi 0, %s47
      %s51 = sphi 0, %s50
      %s67 = sphi 0, %s51
      %s71 = sphi 0, %s71
      %s73 = sphi 0, %s71
      %s74 = sphi 0, %s73
      %s88 = sphi 0, %s74
      %s92 = sphi 0, %s92
      %s94 = sphi 0, %s92
      %s95 = sphi 0, %s94
      %s109 = sphi 0, %s95
      %s113 = sphi 0, %s113
      %s115 = sphi 0, %s113
      %s116 = sphi 0, %s115
      %s130 = sphi 0, %s116
      %s134 = sphi 0, %s134
      %s136 = sphi 0, %s134
      %s137 = sphi 0, %s136
      %s151 = sphi 0, %s137
      %s155 = sphi 0, %s155
      %s157 = sphi 0, %s155
      %s158 = sphi 0, %s157
      %s172 = sphi 0, %s158
      %s176 = sphi 0, %s176
      %s178 = sphi 0, %s176
      %s179 = sphi 0, %s178
      %s193 = sphi 0, %s179
      %s197 = sphi 0, %s197
      %s199 = sphi 0, %s197
      %s200 = sphi 0, %s199
      %s214 = sphi 0, %s200
      %s218 = sphi 0, %s218
      %s220 = sphi 0, %s218
      %s221 = sphi 0, %s220
      %s235 = sphi 0, %s221
      %s239 = sphi 0, %s239
      %s241 = sphi 0, %s239
      %s242 = sphi 0, %s241
      %s256 = sphi 0, %s242
      %s260 = sphi 0, %s260
      %s262 = sphi 0, %s260
      %s263 = sphi 0, %s262
      %s277 = sphi 0, %s263
      %s281 = sphi 0, %s281
      %s283 = sphi 0, %s281
      %s284 = sphi 0, %s283
      %s298 = sphi 0, %s284
      %s302 = sphi 0, %s302
      %s304 = sphi 0, %s302
      %s305 = sphi 0, %s304
      %s319 = sphi 0, %s305
      %s327 = sphi 0, %s329
      %s330 = sphi 0, %s327
      %s331 = sphi 0, %s330
      %s347 = sphi 0, %s331
    $region4: #{tpu_custom_call.1} parent=1 // loop_header_branch
      %28 = sbr.rel (%p26) target = $region8
    $region5: #{tpu_custom_call.1} parent=1 // loop_body
      %s30 = ssub.s32 %s25, 1
      %s31 = ssub.s32 %s25, 2
      %s38 = sadd.s32 1, %s33
      %p39 = scmp.ge.s32.totalorder %s38, 1
      %s40 = scalar_select %p39, 0, %s38
      %s41 = sadd.s32 1, %s32
      %s42 = scalar_select %p39, %s41, %s32
      %p43 = scmp.ge.s32.totalorder %s42, 2
      %s44 = scalar_select %p43, 0, %s42
      %s45 = ssub.s32 %s32, %s44
      %p46 = scmp.eq.s32.totalorder %s45, 0
      %s48 = sadd.s32 %s47, 1
      %s49 = scalar_select %p46, %s47, %s48
      %p52 = pneg %p46
      %p53 = scmp.eq.s32.totalorder %s25, 1
      %p54 = por %p52, %p53
      %p55 = scmp.ne.s32.totalorder %s47, %s50
      %p56 = scmp.eq.s32.totalorder %s25, 0
      %p57 = por %p55, %p56
      %p58 = scmp.ne.s32.totalorder %s47, %s50
      %p59 = scmp.eq.s32.totalorder %s30, 1
      %p60 = por %p58, %p59
      %p61 = scmp.ne.s32.totalorder %s50, %s51
      %p62 = scmp.eq.s32.totalorder %s30, 0
      %p63 = por %p61, %p62
      %p64 = scmp.ne.s32.totalorder %s50, %s51
      %p65 = scmp.eq.s32.totalorder %s31, 1
      %p66 = por %p64, %p65
      %p68 = scmp.ne.s32.totalorder %s51, %s67
      %p69 = scmp.eq.s32.totalorder %s31, 0
      %p70 = por %p68, %p69
      %s72 = sadd.s32 %s71, 1
      %p75 = scmp.eq.s32.totalorder %s25, 1
      %p76 = scmp.ne.s32.totalorder %s71, %s73
      %p77 = scmp.eq.s32.totalorder %s25, 0
      %p78 = por %p76, %p77
      %p79 = scmp.ne.s32.totalorder %s71, %s73
      %p80 = scmp.eq.s32.totalorder %s30, 1
      %p81 = por %p79, %p80
      %p82 = scmp.ne.s32.totalorder %s73, %s74
      %p83 = scmp.eq.s32.totalorder %s30, 0
      %p84 = por %p82, %p83
      %p85 = scmp.ne.s32.totalorder %s73, %s74
      %p86 = scmp.eq.s32.totalorder %s31, 1
      %p87 = por %p85, %p86
      %p89 = scmp.ne.s32.totalorder %s74, %s88
      %p90 = scmp.eq.s32.totalorder %s31, 0
      %p91 = por %p89, %p90
      %s93 = sadd.s32 %s92, 1
      %p96 = scmp.eq.s32.totalorder %s25, 1
      %p97 = scmp.ne.s32.totalorder %s92, %s94
      %p98 = scmp.eq.s32.totalorder %s25, 0
      %p99 = por %p97, %p98
      %p100 = scmp.ne.s32.totalorder %s92, %s94
      %p101 = scmp.eq.s32.totalorder %s30, 1
      %p102 = por %p100, %p101
      %p103 = scmp.ne.s32.totalorder %s94, %s95
      %p104 = scmp.eq.s32.totalorder %s30, 0
      %p105 = por %p103, %p104
      %p106 = scmp.ne.s32.totalorder %s94, %s95
      %p107 = scmp.eq.s32.totalorder %s31, 1
      %p108 = por %p106, %p107
      %p110 = scmp.ne.s32.totalorder %s95, %s109
      %p111 = scmp.eq.s32.totalorder %s31, 0
      %p112 = por %p110, %p111
      %s114 = sadd.s32 %s113, 1
      %p117 = scmp.eq.s32.totalorder %s25, 1
      %p118 = scmp.ne.s32.totalorder %s113, %s115
      %p119 = scmp.eq.s32.totalorder %s25, 0
      %p120 = por %p118, %p119
      %p121 = scmp.ne.s32.totalorder %s113, %s115
      %p122 = scmp.eq.s32.totalorder %s30, 1
      %p123 = por %p121, %p122
      %p124 = scmp.ne.s32.totalorder %s115, %s116
      %p125 = scmp.eq.s32.totalorder %s30, 0
      %p126 = por %p124, %p125
      %p127 = scmp.ne.s32.totalorder %s115, %s116
      %p128 = scmp.eq.s32.totalorder %s31, 1
      %p129 = por %p127, %p128
      %p131 = scmp.ne.s32.totalorder %s116, %s130
      %p132 = scmp.eq.s32.totalorder %s31, 0
      %p133 = por %p131, %p132
      %s135 = sadd.s32 %s134, 1
      %p138 = scmp.eq.s32.totalorder %s25, 1
      %p139 = scmp.ne.s32.totalorder %s134, %s136
      %p140 = scmp.eq.s32.totalorder %s25, 0
      %p141 = por %p139, %p140
      %p142 = scmp.ne.s32.totalorder %s134, %s136
      %p143 = scmp.eq.s32.totalorder %s30, 1
      %p144 = por %p142, %p143
      %p145 = scmp.ne.s32.totalorder %s136, %s137
      %p146 = scmp.eq.s32.totalorder %s30, 0
      %p147 = por %p145, %p146
      %p148 = scmp.ne.s32.totalorder %s136, %s137
      %p149 = scmp.eq.s32.totalorder %s31, 1
      %p150 = por %p148, %p149
      %p152 = scmp.ne.s32.totalorder %s137, %s151
      %p153 = scmp.eq.s32.totalorder %s31, 0
      %p154 = por %p152, %p153
      %s156 = sadd.s32 %s155, 1
      %p159 = scmp.eq.s32.totalorder %s25, 1
      %p160 = scmp.ne.s32.totalorder %s155, %s157
      %p161 = scmp.eq.s32.totalorder %s25, 0
      %p162 = por %p160, %p161
      %p163 = scmp.ne.s32.totalorder %s155, %s157
      %p164 = scmp.eq.s32.totalorder %s30, 1
      %p165 = por %p163, %p164
      %p166 = scmp.ne.s32.totalorder %s157, %s158
      %p167 = scmp.eq.s32.totalorder %s30, 0
      %p168 = por %p166, %p167
      %p169 = scmp.ne.s32.totalorder %s157, %s158
      %p170 = scmp.eq.s32.totalorder %s31, 1
      %p171 = por %p169, %p170
      %p173 = scmp.ne.s32.totalorder %s158, %s172
      %p174 = scmp.eq.s32.totalorder %s31, 0
      %p175 = por %p173, %p174
      %s177 = sadd.s32 %s176, 1
      %p180 = scmp.eq.s32.totalorder %s25, 1
      %p181 = scmp.ne.s32.totalorder %s176, %s178
      %p182 = scmp.eq.s32.totalorder %s25, 0
      %p183 = por %p181, %p182
      %p184 = scmp.ne.s32.totalorder %s176, %s178
      %p185 = scmp.eq.s32.totalorder %s30, 1
      %p186 = por %p184, %p185
      %p187 = scmp.ne.s32.totalorder %s178, %s179
      %p188 = scmp.eq.s32.totalorder %s30, 0
      %p189 = por %p187, %p188
      %p190 = scmp.ne.s32.totalorder %s178, %s179
      %p191 = scmp.eq.s32.totalorder %s31, 1
      %p192 = por %p190, %p191
      %p194 = scmp.ne.s32.totalorder %s179, %s193
      %p195 = scmp.eq.s32.totalorder %s31, 0
      %p196 = por %p194, %p195
      %s198 = sadd.s32 %s197, 1
      %p201 = scmp.eq.s32.totalorder %s25, 1
      %p202 = scmp.ne.s32.totalorder %s197, %s199
      %p203 = scmp.eq.s32.totalorder %s25, 0
      %p204 = por %p202, %p203
      %p205 = scmp.ne.s32.totalorder %s197, %s199
      %p206 = scmp.eq.s32.totalorder %s30, 1
      %p207 = por %p205, %p206
      %p208 = scmp.ne.s32.totalorder %s199, %s200
      %p209 = scmp.eq.s32.totalorder %s30, 0
      %p210 = por %p208, %p209
      %p211 = scmp.ne.s32.totalorder %s199, %s200
      %p212 = scmp.eq.s32.totalorder %s31, 1
      %p213 = por %p211, %p212
      %p215 = scmp.ne.s32.totalorder %s200, %s214
      %p216 = scmp.eq.s32.totalorder %s31, 0
      %p217 = por %p215, %p216
      %s219 = sadd.s32 %s218, 1
      %p222 = scmp.eq.s32.totalorder %s25, 1
      %p223 = scmp.ne.s32.totalorder %s218, %s220
      %p224 = scmp.eq.s32.totalorder %s25, 0
      %p225 = por %p223, %p224
      %p226 = scmp.ne.s32.totalorder %s218, %s220
      %p227 = scmp.eq.s32.totalorder %s30, 1
      %p228 = por %p226, %p227
      %p229 = scmp.ne.s32.totalorder %s220, %s221
      %p230 = scmp.eq.s32.totalorder %s30, 0
      %p231 = por %p229, %p230
      %p232 = scmp.ne.s32.totalorder %s220, %s221
      %p233 = scmp.eq.s32.totalorder %s31, 1
      %p234 = por %p232, %p233
      %p236 = scmp.ne.s32.totalorder %s221, %s235
      %p237 = scmp.eq.s32.totalorder %s31, 0
      %p238 = por %p236, %p237
      %s240 = sadd.s32 %s239, 1
      %p243 = scmp.eq.s32.totalorder %s25, 1
      %p244 = scmp.ne.s32.totalorder %s239, %s241
      %p245 = scmp.eq.s32.totalorder %s25, 0
      %p246 = por %p244, %p245
      %p247 = scmp.ne.s32.totalorder %s239, %s241
      %p248 = scmp.eq.s32.totalorder %s30, 1
      %p249 = por %p247, %p248
      %p250 = scmp.ne.s32.totalorder %s241, %s242
      %p251 = scmp.eq.s32.totalorder %s30, 0
      %p252 = por %p250, %p251
      %p253 = scmp.ne.s32.totalorder %s241, %s242
      %p254 = scmp.eq.s32.totalorder %s31, 1
      %p255 = por %p253, %p254
      %p257 = scmp.ne.s32.totalorder %s242, %s256
      %p258 = scmp.eq.s32.totalorder %s31, 0
      %p259 = por %p257, %p258
      %s261 = sadd.s32 %s260, 1
      %p264 = scmp.eq.s32.totalorder %s25, 1
      %p265 = scmp.ne.s32.totalorder %s260, %s262
      %p266 = scmp.eq.s32.totalorder %s25, 0
      %p267 = por %p265, %p266
      %p268 = scmp.ne.s32.totalorder %s260, %s262
      %p269 = scmp.eq.s32.totalorder %s30, 1
      %p270 = por %p268, %p269
      %p271 = scmp.ne.s32.totalorder %s262, %s263
      %p272 = scmp.eq.s32.totalorder %s30, 0
      %p273 = por %p271, %p272
      %p274 = scmp.ne.s32.totalorder %s262, %s263
      %p275 = scmp.eq.s32.totalorder %s31, 1
      %p276 = por %p274, %p275
      %p278 = scmp.ne.s32.totalorder %s263, %s277
      %p279 = scmp.eq.s32.totalorder %s31, 0
      %p280 = por %p278, %p279
      %s282 = sadd.s32 %s281, 1
      %p285 = scmp.eq.s32.totalorder %s25, 1
      %p286 = scmp.ne.s32.totalorder %s281, %s283
      %p287 = scmp.eq.s32.totalorder %s25, 0
      %p288 = por %p286, %p287
      %p289 = scmp.ne.s32.totalorder %s281, %s283
      %p290 = scmp.eq.s32.totalorder %s30, 1
      %p291 = por %p289, %p290
      %p292 = scmp.ne.s32.totalorder %s283, %s284
      %p293 = scmp.eq.s32.totalorder %s30, 0
      %p294 = por %p292, %p293
      %p295 = scmp.ne.s32.totalorder %s283, %s284
      %p296 = scmp.eq.s32.totalorder %s31, 1
      %p297 = por %p295, %p296
      %p299 = scmp.ne.s32.totalorder %s284, %s298
      %p300 = scmp.eq.s32.totalorder %s31, 0
      %p301 = por %p299, %p300
      %s303 = sadd.s32 %s302, 1
      %p306 = scmp.eq.s32.totalorder %s25, 1
      %p307 = scmp.ne.s32.totalorder %s302, %s304
      %p308 = scmp.eq.s32.totalorder %s25, 0
      %p309 = por %p307, %p308
      %p310 = scmp.ne.s32.totalorder %s302, %s304
      %p311 = scmp.eq.s32.totalorder %s30, 1
      %p312 = por %p310, %p311
      %p313 = scmp.ne.s32.totalorder %s304, %s305
      %p314 = scmp.eq.s32.totalorder %s30, 0
      %p315 = por %p313, %p314
      %p316 = scmp.ne.s32.totalorder %s304, %s305
      %p317 = scmp.eq.s32.totalorder %s31, 1
      %p318 = por %p316, %p317
      %p320 = scmp.ne.s32.totalorder %s305, %s319
      %p321 = scmp.eq.s32.totalorder %s31, 0
      %p322 = por %p320, %p321
      %s323 = ssub.s32 %s32, %s44
      %s324 = ssub.s32 %s33, %s40
      %s325 = sor.u32 %s323, %s324
      %p326 = scmp.eq.s32.totalorder %s325, 0
      %s328 = sadd.s32 %s327, 1
      %s329 = scalar_select %p326, %s327, %s328
      %p332 = pneg %p326
      %p333 = scmp.eq.s32.totalorder %s25, 1
      %p334 = por %p332, %p333
      %p335 = scmp.ne.s32.totalorder %s327, %s330
      %p336 = scmp.eq.s32.totalorder %s25, 0
      %p337 = por %p335, %p336
      %p338 = scmp.ne.s32.totalorder %s327, %s330
      %p339 = scmp.eq.s32.totalorder %s30, 1
      %p340 = por %p338, %p339
      %p341 = scmp.ne.s32.totalorder %s330, %s331
      %p342 = scmp.eq.s32.totalorder %s30, 0
      %p343 = por %p341, %p342
      %p344 = scmp.ne.s32.totalorder %s330, %s331
      %p345 = scmp.eq.s32.totalorder %s31, 1
      %p346 = por %p344, %p345
      %p348 = scmp.ne.s32.totalorder %s331, %s347
      %p349 = scmp.eq.s32.totalorder %s31, 0
      %p350 = por %p348, %p349
      %p351 = scmp.le.s32.totalorder 1, %s25
      %p352 = scmp.lt.s32.totalorder %s25, 3
      %p353 = pnand %p351, %p352
      %p354 = pneg %p353
      // Predicated region
      $region9: #{tpu_custom_call.1} parent=5 // pred_check
        _
      $region10: #{tpu_custom_call.1} parent=5 // pred_check_branch
        %356 = sbr.rel (%p353) target = $region12
      $region11: #{tpu_custom_call.1} parent=5 // pred_region
        %s357 = ssub.s32 %s25, 1
        // Predicated region
        $region13: #{tpu_custom_call.1} parent=11 // pred_check
          %p358 = pneg %p84
        $region14: #{tpu_custom_call.1} parent=11 // pred_check_branch
          %360 = sbr.rel (%p358) target = $region16
        $region15: #{tpu_custom_call.1} parent=11 // pred_region
          _
        $region16: #{tpu_custom_call.1} parent=11 // pred_fallthru
          _
        // Predicated region
        $region17: #{tpu_custom_call.1} parent=11 // pred_check
          %p361 = pneg %p105
        $region18: #{tpu_custom_call.1} parent=11 // pred_check_branch
          %363 = sbr.rel (%p361) target = $region20
        $region19: #{tpu_custom_call.1} parent=11 // pred_region
          _
        $region20: #{tpu_custom_call.1} parent=11 // pred_fallthru
          _
        // Predicated region
        $region21: #{tpu_custom_call.1} parent=11 // pred_check
          %p364 = pneg %p126
        $region22: #{tpu_custom_call.1} parent=11 // pred_check_branch
          %366 = sbr.rel (%p364) target = $region24
        $region23: #{tpu_custom_call.1} parent=11 // pred_region
          _
        $region24: #{tpu_custom_call.1} parent=11 // pred_fallthru
          _
        // Predicated region
        $region25: #{tpu_custom_call.1} parent=11 // pred_check
          %p367 = pneg %p147
        $region26: #{tpu_custom_call.1} parent=11 // pred_check_branch
          %369 = sbr.rel (%p367) target = $region28
        $region27: #{tpu_custom_call.1} parent=11 // pred_region
          _
        $region28: #{tpu_custom_call.1} parent=11 // pred_fallthru
          _
        // Predicated region
        $region29: #{tpu_custom_call.1} parent=11 // pred_check
          %p370 = pneg %p168
        $region30: #{tpu_custom_call.1} parent=11 // pred_check_branch
          %372 = sbr.rel (%p370) target = $region32
        $region31: #{tpu_custom_call.1} parent=11 // pred_region
          _
        $region32: #{tpu_custom_call.1} parent=11 // pred_fallthru
          _
        // Predicated region
        $region33: #{tpu_custom_call.1} parent=11 // pred_check
          %p373 = pneg %p189
        $region34: #{tpu_custom_call.1} parent=11 // pred_check_branch
          %375 = sbr.rel (%p373) target = $region36
        $region35: #{tpu_custom_call.1} parent=11 // pred_region
          _
        $region36: #{tpu_custom_call.1} parent=11 // pred_fallthru
          _
        // Predicated region
        $region37: #{tpu_custom_call.1} parent=11 // pred_check
          %p376 = pneg %p210
        $region38: #{tpu_custom_call.1} parent=11 // pred_check_branch
          %378 = sbr.rel (%p376) target = $region40
        $region39: #{tpu_custom_call.1} parent=11 // pred_region
          %s380 = ssub.s32 16, 16
          %381 = vsyncadd [#allocation3], %s380
          %s383 = sshll.u32 [#allocation2], 4
          %s384 = int_to_ptr.vmem [resolvable:$true] %s383
          %386 = dma.hbm_to_vmem [thread:$0]  %s7, 16, %s384, [#allocation3]
        $region40: #{tpu_custom_call.1} parent=11 // pred_fallthru
          _
        // Predicated region
        $region41: #{tpu_custom_call.1} parent=11 // pred_check
          %p387 = pneg %p231
        $region42: #{tpu_custom_call.1} parent=11 // pred_check_branch
          %389 = sbr.rel (%p387) target = $region44
        $region43: #{tpu_custom_call.1} parent=11 // pred_region
          %s391 = ssub.s32 16, 16
          %392 = vsyncadd [#allocation6], %s391
          %s394 = sshll.u32 [#allocation5], 4
          %s395 = int_to_ptr.vmem [resolvable:$true] %s394
          %397 = dma.hbm_to_vmem [thread:$0]  %s8, 16, %s395, [#allocation6]
        $region44: #{tpu_custom_call.1} parent=11 // pred_fallthru
          _
        // Predicated region
        $region45: #{tpu_custom_call.1} parent=11 // pred_check
          %p398 = pneg %p252
        $region46: #{tpu_custom_call.1} parent=11 // pred_check_branch
          %400 = sbr.rel (%p398) target = $region48
        $region47: #{tpu_custom_call.1} parent=11 // pred_region
          %s402 = ssub.s32 256, 256
          %403 = vsyncadd [#allocation6], %s402
          %s404 = sshll.u32 [#allocation7], 4
          %s405 = int_to_ptr.vmem [resolvable:$true] %s404
          %410 = dma.hbm_to_vmem [thread:$0]  %s9, 256, %s405, [#allocation6], 64, 64, 4
        $region48: #{tpu_custom_call.1} parent=11 // pred_fallthru
          _
        // Predicated region
        $region49: #{tpu_custom_call.1} parent=11 // pred_check
          %p411 = pneg %p273
        $region50: #{tpu_custom_call.1} parent=11 // pred_check_branch
          %413 = sbr.rel (%p411) target = $region52
        $region51: #{tpu_custom_call.1} parent=11 // pred_region
          %s415 = ssub.s32 16, 16
          %416 = vsyncadd [#allocation9], %s415
          %s418 = sshll.u32 [#allocation8], 4
          %s419 = int_to_ptr.vmem [resolvable:$true] %s418
          %421 = dma.hbm_to_vmem [thread:$0]  %s10, 16, %s419, [#allocation9]
        $region52: #{tpu_custom_call.1} parent=11 // pred_fallthru
          _
        // Predicated region
        $region53: #{tpu_custom_call.1} parent=11 // pred_check
          %p422 = pneg %p294
        $region54: #{tpu_custom_call.1} parent=11 // pred_check_branch
          %424 = sbr.rel (%p422) target = $region56
        $region55: #{tpu_custom_call.1} parent=11 // pred_region
          _
        $region56: #{tpu_custom_call.1} parent=11 // pred_fallthru
          _
        // Predicated region
        $region57: #{tpu_custom_call.1} parent=11 // pred_check
          %p425 = pneg %p315
        $region58: #{tpu_custom_call.1} parent=11 // pred_check_branch
          %427 = sbr.rel (%p425) target = $region60
        $region59: #{tpu_custom_call.1} parent=11 // pred_region
          _
        $region60: #{tpu_custom_call.1} parent=11 // pred_fallthru
          _
      $region12: #{tpu_custom_call.1} parent=5 // pred_fallthru
        _
      %p428 = scmp.lt.s32.totalorder %s25, 2
      // Predicated region
      $region61: #{tpu_custom_call.1} parent=5 // pred_check
        %p429 = pneg %p428
      $region62: #{tpu_custom_call.1} parent=5 // pred_check_branch
        %431 = sbr.rel (%p429) target = $region64
      $region63: #{tpu_custom_call.1} parent=5 // pred_region
        // Predicated region
        $region65: #{tpu_custom_call.1} parent=63 // pred_check
          %p432 = pneg %p57
        $region66: #{tpu_custom_call.1} parent=63 // pred_check_branch
          %434 = sbr.rel (%p432) target = $region68
        $region67: #{tpu_custom_call.1} parent=63 // pred_region
          %p435 = scmp.lt.s32.totalorder %s32, 1
          %s436 = scalar_select %p435, %s32, 1
          %s437 = smul.addr %s436, 8
          %s438 = scalar_lea.vmem %s0, %s437
        $region68: #{tpu_custom_call.1} parent=63 // pred_fallthru
          _
      $region64: #{tpu_custom_call.1} parent=5 // pred_fallthru
        _
      %p439 = scmp.le.s32.totalorder 1, %s25
      %p440 = scmp.lt.s32.totalorder %s25, 3
      %p441 = pnand %p439, %p440
      %p442 = pneg %p441
      // Predicated region
      $region69: #{tpu_custom_call.1} parent=5 // pred_check
        _
      $region70: #{tpu_custom_call.1} parent=5 // pred_check_branch
        %444 = sbr.rel (%p441) target = $region72
      $region71: #{tpu_custom_call.1} parent=5 // pred_region
        %s445 = ssub.s32 %s25, 1
        // Predicated region
        $region73: #{tpu_custom_call.1} parent=71 // pred_check
          %p446 = pneg %p210
        $region74: #{tpu_custom_call.1} parent=71 // pred_check_branch
          %448 = sbr.rel (%p446) target = $region76
        $region75: #{tpu_custom_call.1} parent=71 // pred_region
          %449 = dma.done [#allocation3], 16
        $region76: #{tpu_custom_call.1} parent=71 // pred_fallthru
          _
        // Predicated region
        $region77: #{tpu_custom_call.1} parent=71 // pred_check
          %p450 = pneg %p231
        $region78: #{tpu_custom_call.1} parent=71 // pred_check_branch
          %452 = sbr.rel (%p450) target = $region80
        $region79: #{tpu_custom_call.1} parent=71 // pred_region
          %453 = dma.done [#allocation6], 16
        $region80: #{tpu_custom_call.1} parent=71 // pred_fallthru
          _
        // Predicated region
        $region81: #{tpu_custom_call.1} parent=71 // pred_check
          %p454 = pneg %p252
        $region82: #{tpu_custom_call.1} parent=71 // pred_check_branch
          %456 = sbr.rel (%p454) target = $region84
        $region83: #{tpu_custom_call.1} parent=71 // pred_region
          %457 = dma.done [#allocation6], 256
        $region84: #{tpu_custom_call.1} parent=71 // pred_fallthru
          _
        // Predicated region
        $region85: #{tpu_custom_call.1} parent=71 // pred_check
          %p458 = pneg %p273
        $region86: #{tpu_custom_call.1} parent=71 // pred_check_branch
          %460 = sbr.rel (%p458) target = $region88
        $region87: #{tpu_custom_call.1} parent=71 // pred_region
          %461 = dma.done [#allocation9], 16
        $region88: #{tpu_custom_call.1} parent=71 // pred_fallthru
          _
        %p462 = scmp.lt.s32.totalorder %s34, 1
        %s463 = scalar_select %p462, %s34, 1
        %s464 = smul.addr %s463, 8
        %s465 = scalar_lea.vmem %s0, %s464
        %p466 = pneg %p63
        %p467 = pneg %p60
        %p468 = pneg %p84
        %p469 = pneg %p81
        %p470 = pneg %p105
        %p471 = pneg %p102
        %p472 = pneg %p126
        %p473 = pneg %p123
        %p474 = pneg %p147
        %p475 = pneg %p144
        %p476 = pneg %p168
        %p477 = pneg %p165
        %p478 = pneg %p189
        %p479 = pneg %p186
        %p480 = pneg %p210
        %p481 = pneg %p207
        %p482 = pneg %p231
        %p483 = pneg %p228
        %p484 = pneg %p252
        %p485 = pneg %p249
        %p486 = pneg %p273
        %p487 = pneg %p270
        %p488 = pneg %p294
        %p489 = pneg %p291
        %p490 = pneg %p315
        %p491 = pneg %p312
        %p492 = pneg %p343
        %p493 = pneg %p340
        %s494 = sand.u32 %s330, 1
        %s495 = scalar_lea.sflag [#allocation4], %s494
        %s496 = sand.u32 %s330, 1
        %s497 = smul.addr %s496, 8
        %s498 = scalar_lea.vmem [#allocation10], %s497
        %p499 = scmp.lt.s32.totalorder %s34, 1
        %s500 = scalar_select %p499, %s34, 1
        %s501 = smul.addr %s500, 8
        %s502 = scalar_lea.vmem %s0, %s501
        %v504 = vld [vmem:[%s502] sm:$0xff]
        %v505 = vld [vmem:[%s1] sm:$0x1]
        %v506 = vld [vmem:[%s2] sm:$0x1]
        %vm507 = vcmask 261120
        %v508 = vsel %vm507, %v504, 0.0
        %509 = vadd.xlane.f32.xlu0 %v508
        %v510 = vpop.xlane.xlu0 %509
        %v511 = vrcp.pop 32.0
        %v512 = vmul.f32 %v510, %v511
        %v513 = vsub.f32 %v504, %v512
        %v514 = vmul.f32 %v513, %v513
        %v515 = vsel %vm507, %v514, 0.0
        %516 = vadd.xlane.f32.xlu0 %v515
        %v517 = vpop.xlane.xlu0 %516
        %v518 = vmul.f32 %v517, %v511
        %v519 = vadd.f32 %v518, 1e-05
        %v520 = vrsqrt.pop %v519
        %v521 = vmul.f32 %v513, %v520
        %v523 = vlaneseq
        %v524 = vshrl.u32 %v523, 7
        %v525 = vsub.s32 0, %v524
        %v526 = vrot.slane %v505, %v525
        %v528 = vmul.f32 %v521, %v526
        %v530 = vlaneseq
        %v531 = vshrl.u32 %v530, 7
        %v532 = vsub.s32 0, %v531
        %v533 = vrot.slane %v506, %v532
        %v535 = vadd.f32 %v528, %v533
        %v536 = vpack.c.bf16 %v535, %v535
        %v537 = vld [vmem:[%s3] sm:$0xf]
        %v538 = vld [vmem:[%s3 + $0x4] sm:$0xf]
        %v539 = vld [vmem:[%s3 + $0x8] sm:$0xf]
        %v540 = vld [vmem:[%s3 + $0xc] sm:$0xf]
        %v541 = vld [vmem:[%s4] sm:$0x1]
        %v543 = vlaneseq
        %v544 = vshrl.u32 %v543, 7
        %v545 = vsub.s32 0, %v544
        %v546 = vrot.slane %v541, %v545
        %v552 = vunpack.c.l.b16 %v537
        %v553 = vunpack.c.l.b16 %v538
        %v554 = vunpack.c.l.b16 %v539
        %v555 = vunpack.c.l.b16 %v540
        %v556 = vpack.c.b16 %v553, %v552
        %v557 = vpack.c.b16 %v555, %v554
        %v561 = vsel %vm507, %v536, 0
        %563 = vmatprep.subr.bf16.mxu0 0
        %564 = vmatpush1.bf16.msra.mxu0 0
        %565 = vmatprep.subr.bf16.mxu0 0
        %566 = vmatpush1.bf16.msra.mxu0 0
        %567 = vmatprep.subr.bf16.mxu0 0
        %568 = vmatpush1.bf16.msra.mxu0 0
        %569 = vmatprep.subr.bf16.mxu0 0
        %570 = vmatpush1.bf16.msra.mxu0 0
        %571 = vmatprep.subr.bf16.mxu0 0
        %572 = vmatpush1.bf16.msra.mxu0 0
        %573 = vmatprep.subr.bf16.mxu0 0
        %574 = vmatpush1.bf16.msra.mxu0 0
        %575 = vmatprep.subr.bf16.mxu0 0
        %576 = vmatpush1.bf16.msra.mxu0 %v557
        %577 = vmatprep.subr.bf16.mxu0 0
        %578 = vmatpush1.bf16.msra.mxu0 %v556
        %579 = vmatprep.subr.bf16.mxu0 0
        %580 = vmatpush2.bf16.msra.mxu0 0
        %581 = vmatprep.subr.bf16.mxu0 0
        %582 = vmatpush2.bf16.msra.mxu0 0
        %583 = vmatprep.subr.bf16.mxu0 0
        %584 = vmatpush2.bf16.msra.mxu0 0
        %585 = vmatprep.subr.bf16.mxu0 0
        %586 = vmatpush2.bf16.msra.mxu0 0
        %587 = vmatprep.subr.bf16.mxu0 0
        %588 = vmatpush2.bf16.msra.mxu0 0
        %589 = vmatprep.subr.bf16.mxu0 0
        %590 = vmatpush2.bf16.msra.mxu0 0
        %591 = vmatprep.subr.bf16.mxu0 0
        %592 = vmatpush2.bf16.msra.mxu0 0
        %593 = vmatprep.subr.bf16.mxu0 0
        %594 = vmatpush2.bf16.msra.mxu0 0
        %595 = vmatprep.mubr.bf16.mxu0 0
        %596 = vmatmul.mubr.bf16.gmra.mxu0 %v561
        %v597 = vpop.f32.mrf.mxu0
        %v598 = vadd.f32 %v546, %v597
        %v599 = vpop.f32.mrf.mxu0
        %v600 = vpop.f32.mrf.mxu0
        %v601 = vpop.f32.mrf.mxu0
        %602 = vdwg.mxu0
        %v603 = vmul.f32 %v598, 0.35355338
        %605 = vrot.lane.b32.xlu0 %v603, 120
        %v606 = vpop.permute.xlu0 %605
        %608 = vrot.lane.b32.xlu0 %v603, 112
        %v609 = vpop.permute.xlu0 %608
        %611 = vrot.lane.b32.xlu0 %v603, 104
        %v612 = vpop.permute.xlu0 %611
        %v614 = vcombine.low %v603, %v609
        %v615 = vcombine.high %v603, %v609
        %v617 = vunpack.c.l.s4 1983009808
        %v618 = vunpack.c.0.s8 %v617
        %v619 = vlaneseq
        %v620 = vshrl.u32 %v619, 7
        %v621 = vsub.s32 %v618, %v620
        %v622 = vrot.slane %v614, %v621
        %v624 = vunpack.c.l.s4 1983009808
        %v625 = vunpack.c.0.s8 %v624
        %v626 = vlaneseq
        %v627 = vshrl.u32 %v626, 7
        %v628 = vsub.s32 %v625, %v627
        %v629 = vrot.slane %v615, %v628
        %v630 = vcombine.low %v606, %v612
        %v631 = vcombine.high %v606, %v612
        %v633 = vunpack.c.l.s4 1983009808
        %v634 = vunpack.c.0.s8 %v633
        %v635 = vlaneseq
        %v636 = vshrl.u32 %v635, 7
        %v637 = vsub.s32 %v634, %v636
        %v638 = vrot.slane %v630, %v637
        %v640 = vunpack.c.l.s4 1983009808
        %v641 = vunpack.c.0.s8 %v640
        %v642 = vlaneseq
        %v643 = vshrl.u32 %v642, 7
        %v644 = vsub.s32 %v641, %v643
        %v645 = vrot.slane %v631, %v644
        %v646 = vcombine.low %v622, %v638
        %v647 = vcombine.high %v622, %v638
        %v649 = vunpack.c.l.s4 1934713408
        %v650 = vunpack.c.0.s8 %v649
        %v651 = vlaneseq
        %v652 = vshrl.u32 %v651, 7
        %v653 = vsub.s32 %v650, %v652
        %v654 = vrot.slane %v646, %v653
        %v656 = vunpack.c.l.s4 1934713408
        %v657 = vunpack.c.0.s8 %v656
        %v658 = vlaneseq
        %v659 = vshrl.u32 %v658, 7
        %v660 = vsub.s32 %v657, %v659
        %v661 = vrot.slane %v647, %v660
        %v662 = vcombine.low %v629, %v645
        %v663 = vcombine.high %v629, %v645
        %v665 = vunpack.c.l.s4 1934713408
        %v666 = vunpack.c.0.s8 %v665
        %v667 = vlaneseq
        %v668 = vshrl.u32 %v667, 7
        %v669 = vsub.s32 %v666, %v668
        %v670 = vrot.slane %v662, %v669
        %v672 = vunpack.c.l.s4 1934713408
        %v673 = vunpack.c.0.s8 %v672
        %v674 = vlaneseq
        %v675 = vshrl.u32 %v674, 7
        %v676 = vsub.s32 %v673, %v675
        %v677 = vrot.slane %v663, %v676
        %v678 = vcombine.high %v654, 0.0
        %v679 = vcombine.high %v661, 0.0
        %v680 = vcombine.high %v670, 0.0
        %v681 = vcombine.high %v677, 0.0
        %v682 = vcombine.low %v654, %v661
        %v684 = vunpack.c.l.s4 1983009808
        %v685 = vunpack.c.0.s8 %v684
        %v686 = vlaneseq
        %v687 = vshrl.u32 %v686, 7
        %v688 = vsub.s32 %v685, %v687
        %v689 = vrot.slane %v682, %v688
        %v690 = vcombine.low %v678, %v679
        %v692 = vunpack.c.l.s4 1983009808
        %v693 = vunpack.c.0.s8 %v692
        %v694 = vlaneseq
        %v695 = vshrl.u32 %v694, 7
        %v696 = vsub.s32 %v693, %v695
        %v697 = vrot.slane %v690, %v696
        %v698 = vcombine.low %v670, %v677
        %v700 = vunpack.c.l.s4 1983009808
        %v701 = vunpack.c.0.s8 %v700
        %v702 = vlaneseq
        %v703 = vshrl.u32 %v702, 7
        %v704 = vsub.s32 %v701, %v703
        %v705 = vrot.slane %v698, %v704
        %v706 = vcombine.low %v680, %v681
        %v708 = vunpack.c.l.s4 1983009808
        %v709 = vunpack.c.0.s8 %v708
        %v710 = vlaneseq
        %v711 = vshrl.u32 %v710, 7
        %v712 = vsub.s32 %v709, %v711
        %v713 = vrot.slane %v706, %v712
        %v714 = vcombine.low %v689, %v697
        %v715 = vcombine.high %v689, %v697
        %v717 = vunpack.c.l.s4 1934713408
        %v718 = vunpack.c.0.s8 %v717
        %v719 = vlaneseq
        %v720 = vshrl.u32 %v719, 7
        %v721 = vsub.s32 %v718, %v720
        %v722 = vrot.slane %v714, %v721
        %v724 = vunpack.c.l.s4 1934713408
        %v725 = vunpack.c.0.s8 %v724
        %v726 = vlaneseq
        %v727 = vshrl.u32 %v726, 7
        %v728 = vsub.s32 %v725, %v727
        %v729 = vrot.slane %v715, %v728
        %v730 = vcombine.low %v705, %v713
        %v731 = vcombine.high %v705, %v713
        %v733 = vunpack.c.l.s4 1934713408
        %v734 = vunpack.c.0.s8 %v733
        %v735 = vlaneseq
        %v736 = vshrl.u32 %v735, 7
        %v737 = vsub.s32 %v734, %v736
        %v738 = vrot.slane %v730, %v737
        %v740 = vunpack.c.l.s4 1934713408
        %v741 = vunpack.c.0.s8 %v740
        %v742 = vlaneseq
        %v743 = vshrl.u32 %v742, 7
        %v744 = vsub.s32 %v741, %v743
        %v745 = vrot.slane %v731, %v744
        %v746 = vcombine.low %v722, %v738
        %v747 = vcombine.high %v722, %v738
        %v748 = vcombine.low %v729, %v745
        %v749 = vcombine.high %v729, %v745
        %v750 = vpack.c.bf16 %v746, %v746
        %v751 = vpack.c.bf16 %v747, %v747
        %v752 = vpack.c.bf16 %v748, %v748
        %v753 = vpack.c.bf16 %v749, %v749
        %755 = vrot.lane.b32.xlu0 %v598, 120
        %v756 = vpop.permute.xlu0 %755
        %757 = vrot.lane.b32.xlu0 %v598, 112
        %v758 = vpop.permute.xlu0 %757
        %759 = vrot.lane.b32.xlu0 %v598, 104
        %v760 = vpop.permute.xlu0 %759
        %761 = vrot.lane.b32.xlu0 %v598, 96
        %v762 = vpop.permute.xlu0 %761
        %763 = vrot.lane.b32.xlu0 %v756, 96
        %v764 = vpop.permute.xlu0 %763
        %765 = vrot.lane.b32.xlu0 %v758, 96
        %v766 = vpop.permute.xlu0 %765
        %767 = vrot.lane.b32.xlu0 %v760, 96
        %v768 = vpop.permute.xlu0 %767
        %v773 = vcombine.low %v762, %v766
        %v774 = vcombine.high %v762, %v766
        %v776 = vunpack.c.l.s4 1983009808
        %v777 = vunpack.c.0.s8 %v776
        %v778 = vlaneseq
        %v779 = vshrl.u32 %v778, 7
        %v780 = vsub.s32 %v777, %v779
        %v781 = vrot.slane %v773, %v780
        %v783 = vunpack.c.l.s4 1983009808
        %v784 = vunpack.c.0.s8 %v783
        %v785 = vlaneseq
        %v786 = vshrl.u32 %v785, 7
        %v787 = vsub.s32 %v784, %v786
        %v788 = vrot.slane %v774, %v787
        %v789 = vcombine.low %v764, %v768
        %v790 = vcombine.high %v764, %v768
        %v792 = vunpack.c.l.s4 1983009808
        %v793 = vunpack.c.0.s8 %v792
        %v794 = vlaneseq
        %v795 = vshrl.u32 %v794, 7
        %v796 = vsub.s32 %v793, %v795
        %v797 = vrot.slane %v789, %v796
        %v799 = vunpack.c.l.s4 1983009808
        %v800 = vunpack.c.0.s8 %v799
        %v801 = vlaneseq
        %v802 = vshrl.u32 %v801, 7
        %v803 = vsub.s32 %v800, %v802
        %v804 = vrot.slane %v790, %v803
        %v805 = vcombine.low %v781, %v797
        %v806 = vcombine.high %v781, %v797
        %v808 = vunpack.c.l.s4 1934713408
        %v809 = vunpack.c.0.s8 %v808
        %v810 = vlaneseq
        %v811 = vshrl.u32 %v810, 7
        %v812 = vsub.s32 %v809, %v811
        %v813 = vrot.slane %v805, %v812
        %v815 = vunpack.c.l.s4 1934713408
        %v816 = vunpack.c.0.s8 %v815
        %v817 = vlaneseq
        %v818 = vshrl.u32 %v817, 7
        %v819 = vsub.s32 %v816, %v818
        %v820 = vrot.slane %v806, %v819
        %v821 = vcombine.low %v788, %v804
        %v822 = vcombine.high %v788, %v804
        %v824 = vunpack.c.l.s4 1934713408
        %v825 = vunpack.c.0.s8 %v824
        %v826 = vlaneseq
        %v827 = vshrl.u32 %v826, 7
        %v828 = vsub.s32 %v825, %v827
        %v829 = vrot.slane %v821, %v828
        %v831 = vunpack.c.l.s4 1934713408
        %v832 = vunpack.c.0.s8 %v831
        %v833 = vlaneseq
        %v834 = vshrl.u32 %v833, 7
        %v835 = vsub.s32 %v832, %v834
        %v836 = vrot.slane %v822, %v835
        %v837 = vcombine.high %v813, 0.0
        %v838 = vcombine.high %v820, 0.0
        %v839 = vcombine.high %v829, 0.0
        %v840 = vcombine.high %v836, 0.0
        %v841 = vcombine.low %v813, %v820
        %v843 = vunpack.c.l.s4 1983009808
        %v844 = vunpack.c.0.s8 %v843
        %v845 = vlaneseq
        %v846 = vshrl.u32 %v845, 7
        %v847 = vsub.s32 %v844, %v846
        %v848 = vrot.slane %v841, %v847
        %v849 = vcombine.low %v837, %v838
        %v851 = vunpack.c.l.s4 1983009808
        %v852 = vunpack.c.0.s8 %v851
        %v853 = vlaneseq
        %v854 = vshrl.u32 %v853, 7
        %v855 = vsub.s32 %v852, %v854
        %v856 = vrot.slane %v849, %v855
        %v857 = vcombine.low %v829, %v836
        %v859 = vunpack.c.l.s4 1983009808
        %v860 = vunpack.c.0.s8 %v859
        %v861 = vlaneseq
        %v862 = vshrl.u32 %v861, 7
        %v863 = vsub.s32 %v860, %v862
        %v864 = vrot.slane %v857, %v863
        %v865 = vcombine.low %v839, %v840
        %v867 = vunpack.c.l.s4 1983009808
        %v868 = vunpack.c.0.s8 %v867
        %v869 = vlaneseq
        %v870 = vshrl.u32 %v869, 7
        %v871 = vsub.s32 %v868, %v870
        %v872 = vrot.slane %v865, %v871
        %v873 = vcombine.low %v848, %v856
        %v874 = vcombine.high %v848, %v856
        %v876 = vunpack.c.l.s4 1934713408
        %v877 = vunpack.c.0.s8 %v876
        %v878 = vlaneseq
        %v879 = vshrl.u32 %v878, 7
        %v880 = vsub.s32 %v877, %v879
        %v881 = vrot.slane %v873, %v880
        %v883 = vunpack.c.l.s4 1934713408
        %v884 = vunpack.c.0.s8 %v883
        %v885 = vlaneseq
        %v886 = vshrl.u32 %v885, 7
        %v887 = vsub.s32 %v884, %v886
        %v888 = vrot.slane %v874, %v887
        %v889 = vcombine.low %v864, %v872
        %v890 = vcombine.high %v864, %v872
        %v892 = vunpack.c.l.s4 1934713408
        %v893 = vunpack.c.0.s8 %v892
        %v894 = vlaneseq
        %v895 = vshrl.u32 %v894, 7
        %v896 = vsub.s32 %v893, %v895
        %v897 = vrot.slane %v889, %v896
        %v899 = vunpack.c.l.s4 1934713408
        %v900 = vunpack.c.0.s8 %v899
        %v901 = vlaneseq
        %v902 = vshrl.u32 %v901, 7
        %v903 = vsub.s32 %v900, %v902
        %v904 = vrot.slane %v890, %v903
        %v905 = vcombine.low %v881, %v897
        %v906 = vcombine.high %v881, %v897
        %v907 = vcombine.low %v888, %v904
        %v908 = vcombine.high %v888, %v904
        %v909 = vpack.c.bf16 %v905, %v905
        %v910 = vpack.c.bf16 %v906, %v906
        %v911 = vpack.c.bf16 %v907, %v907
        %v912 = vpack.c.bf16 %v908, %v908
        %913 = vrot.lane.b32.xlu0 %v598, 64
        %v914 = vpop.permute.xlu0 %913
        %915 = vrot.lane.b32.xlu0 %v756, 64
        %v916 = vpop.permute.xlu0 %915
        %917 = vrot.lane.b32.xlu0 %v758, 64
        %v918 = vpop.permute.xlu0 %917
        %919 = vrot.lane.b32.xlu0 %v760, 64
        %v920 = vpop.permute.xlu0 %919
        %v925 = vcombine.low %v914, %v918
        %v926 = vcombine.high %v914, %v918
        %v928 = vunpack.c.l.s4 1983009808
        %v929 = vunpack.c.0.s8 %v928
        %v930 = vlaneseq
        %v931 = vshrl.u32 %v930, 7
        %v932 = vsub.s32 %v929, %v931
        %v933 = vrot.slane %v925, %v932
        %v935 = vunpack.c.l.s4 1983009808
        %v936 = vunpack.c.0.s8 %v935
        %v937 = vlaneseq
        %v938 = vshrl.u32 %v937, 7
        %v939 = vsub.s32 %v936, %v938
        %v940 = vrot.slane %v926, %v939
        %v941 = vcombine.low %v916, %v920
        %v942 = vcombine.high %v916, %v920
        %v944 = vunpack.c.l.s4 1983009808
        %v945 = vunpack.c.0.s8 %v944
        %v946 = vlaneseq
        %v947 = vshrl.u32 %v946, 7
        %v948 = vsub.s32 %v945, %v947
        %v949 = vrot.slane %v941, %v948
        %v951 = vunpack.c.l.s4 1983009808
        %v952 = vunpack.c.0.s8 %v951
        %v953 = vlaneseq
        %v954 = vshrl.u32 %v953, 7
        %v955 = vsub.s32 %v952, %v954
        %v956 = vrot.slane %v942, %v955
        %v957 = vcombine.low %v933, %v949
        %v958 = vcombine.high %v933, %v949
        %v960 = vunpack.c.l.s4 1934713408
        %v961 = vunpack.c.0.s8 %v960
        %v962 = vlaneseq
        %v963 = vshrl.u32 %v962, 7
        %v964 = vsub.s32 %v961, %v963
        %v965 = vrot.slane %v957, %v964
        %v967 = vunpack.c.l.s4 1934713408
        %v968 = vunpack.c.0.s8 %v967
        %v969 = vlaneseq
        %v970 = vshrl.u32 %v969, 7
        %v971 = vsub.s32 %v968, %v970
        %v972 = vrot.slane %v958, %v971
        %v973 = vcombine.low %v940, %v956
        %v974 = vcombine.high %v940, %v956
        %v976 = vunpack.c.l.s4 1934713408
        %v977 = vunpack.c.0.s8 %v976
        %v978 = vlaneseq
        %v979 = vshrl.u32 %v978, 7
        %v980 = vsub.s32 %v977, %v979
        %v981 = vrot.slane %v973, %v980
        %v983 = vunpack.c.l.s4 1934713408
        %v984 = vunpack.c.0.s8 %v983
        %v985 = vlaneseq
        %v986 = vshrl.u32 %v985, 7
        %v987 = vsub.s32 %v984, %v986
        %v988 = vrot.slane %v974, %v987
        %v989 = vcombine.high %v965, 0.0
        %v990 = vcombine.high %v972, 0.0
        %v991 = vcombine.high %v981, 0.0
        %v992 = vcombine.high %v988, 0.0
        %v993 = vcombine.low %v965, %v972
        %v995 = vunpack.c.l.s4 1983009808
        %v996 = vunpack.c.0.s8 %v995
        %v997 = vlaneseq
        %v998 = vshrl.u32 %v997, 7
        %v999 = vsub.s32 %v996, %v998
        %v1000 = vrot.slane %v993, %v999
        %v1001 = vcombine.low %v989, %v990
        %v1003 = vunpack.c.l.s4 1983009808
        %v1004 = vunpack.c.0.s8 %v1003
        %v1005 = vlaneseq
        %v1006 = vshrl.u32 %v1005, 7
        %v1007 = vsub.s32 %v1004, %v1006
        %v1008 = vrot.slane %v1001, %v1007
        %v1009 = vcombine.low %v981, %v988
        %v1011 = vunpack.c.l.s4 1983009808
        %v1012 = vunpack.c.0.s8 %v1011
        %v1013 = vlaneseq
        %v1014 = vshrl.u32 %v1013, 7
        %v1015 = vsub.s32 %v1012, %v1014
        %v1016 = vrot.slane %v1009, %v1015
        %v1017 = vcombine.low %v991, %v992
        %v1019 = vunpack.c.l.s4 1983009808
        %v1020 = vunpack.c.0.s8 %v1019
        %v1021 = vlaneseq
        %v1022 = vshrl.u32 %v1021, 7
        %v1023 = vsub.s32 %v1020, %v1022
        %v1024 = vrot.slane %v1017, %v1023
        %v1025 = vcombine.low %v1000, %v1008
        %v1026 = vcombine.high %v1000, %v1008
        %v1028 = vunpack.c.l.s4 1934713408
        %v1029 = vunpack.c.0.s8 %v1028
        %v1030 = vlaneseq
        %v1031 = vshrl.u32 %v1030, 7
        %v1032 = vsub.s32 %v1029, %v1031
        %v1033 = vrot.slane %v1025, %v1032
        %v1035 = vunpack.c.l.s4 1934713408
        %v1036 = vunpack.c.0.s8 %v1035
        %v1037 = vlaneseq
        %v1038 = vshrl.u32 %v1037, 7
        %v1039 = vsub.s32 %v1036, %v1038
        %v1040 = vrot.slane %v1026, %v1039
        %v1041 = vcombine.low %v1016, %v1024
        %v1042 = vcombine.high %v1016, %v1024
        %v1044 = vunpack.c.l.s4 1934713408
        %v1045 = vunpack.c.0.s8 %v1044
        %v1046 = vlaneseq
        %v1047 = vshrl.u32 %v1046, 7
        %v1048 = vsub.s32 %v1045, %v1047
        %v1049 = vrot.slane %v1041, %v1048
        %v1051 = vunpack.c.l.s4 1934713408
        %v1052 = vunpack.c.0.s8 %v1051
        %v1053 = vlaneseq
        %v1054 = vshrl.u32 %v1053, 7
        %v1055 = vsub.s32 %v1052, %v1054
        %v1056 = vrot.slane %v1042, %v1055
        %v1057 = vcombine.low %v1033, %v1049
        %v1058 = vcombine.high %v1033, %v1049
        %v1059 = vcombine.low %v1040, %v1056
        %v1060 = vcombine.high %v1040, %v1056
        %v1061 = vpack.c.bf16 %v1057, %v1057
        %v1062 = vpack.c.bf16 %v1058, %v1058
        %v1063 = vpack.c.bf16 %v1059, %v1059
        %v1064 = vpack.c.bf16 %v1060, %v1060
        %vm1065 = vcmask 64512
        %v1067 = vsel %vm1065, %v750, 0
        %v1070 = vsel %vm1065, %v909, 0
        %1072 = vmatprep.subr.bf16.mxu0 0
        %1073 = vmatpush1.bf16.xpose.msra.mxu0 0
        %1074 = vmatprep.subr.bf16.mxu0 0
        %1075 = vmatpush1.bf16.xpose.msra.mxu0 0
        %1076 = vmatprep.subr.bf16.mxu0 0
        %1077 = vmatpush1.bf16.xpose.msra.mxu0 0
        %1078 = vmatprep.subr.bf16.mxu0 0
        %1079 = vmatpush1.bf16.xpose.msra.mxu0 0
        %1080 = vmatprep.subr.bf16.mxu0 0
        %1081 = vmatpush1.bf16.xpose.msra.mxu0 0
        %1082 = vmatprep.subr.bf16.mxu0 0
        %1083 = vmatpush1.bf16.xpose.msra.mxu0 0
        %1084 = vmatprep.subr.bf16.mxu0 0
        %1085 = vmatpush1.bf16.xpose.msra.mxu0 0
        %1086 = vmatprep.subr.bf16.mxu0 0
        %1087 = vmatpush1.bf16.xpose.msra.mxu0 %v1070
        %1088 = vmatprep.subr.bf16.mxu0 0
        %1089 = vmatpush2.bf16.xpose.msra.mxu0 0
        %1090 = vmatprep.subr.bf16.mxu0 0
        %1091 = vmatpush2.bf16.xpose.msra.mxu0 0
        %1092 = vmatprep.subr.bf16.mxu0 0
        %1093 = vmatpush2.bf16.xpose.msra.mxu0 0
        %1094 = vmatprep.subr.bf16.mxu0 0
        %1095 = vmatpush2.bf16.xpose.msra.mxu0 0
        %1096 = vmatprep.subr.bf16.mxu0 0
        %1097 = vmatpush2.bf16.xpose.msra.mxu0 0
        %1098 = vmatprep.subr.bf16.mxu0 0
        %1099 = vmatpush2.bf16.xpose.msra.mxu0 0
        %1100 = vmatprep.subr.bf16.mxu0 0
        %1101 = vmatpush2.bf16.xpose.msra.mxu0 0
        %1102 = vmatprep.subr.bf16.mxu0 0
        %1103 = vmatpush2.bf16.xpose.msra.mxu0 0
        %1104 = vmatprep.mubr.bf16.mxu0 0
        %1105 = vmatmul.mubr.bf16.gmra.mxu0 %v1067
        %v1106 = vpop.f32.mrf.mxu0
        %v1107 = vadd.f32 0.0, %v1106
        %v1108 = vpop.f32.mrf.mxu0
        %v1109 = vpop.f32.mrf.mxu0
        %v1110 = vpop.f32.mrf.mxu0
        %1111 = vdwg.mxu0
        %v1113 = vsel %vm1065, %v751, 0
        %v1116 = vsel %vm1065, %v910, 0
        %1118 = vmatprep.subr.bf16.mxu0 0
        %1119 = vmatpush1.bf16.xpose.msra.mxu0 0
        %1120 = vmatprep.subr.bf16.mxu0 0
        %1121 = vmatpush1.bf16.xpose.msra.mxu0 0
        %1122 = vmatprep.subr.bf16.mxu0 0
        %1123 = vmatpush1.bf16.xpose.msra.mxu0 0
        %1124 = vmatprep.subr.bf16.mxu0 0
        %1125 = vmatpush1.bf16.xpose.msra.mxu0 0
        %1126 = vmatprep.subr.bf16.mxu0 0
        %1127 = vmatpush1.bf16.xpose.msra.mxu0 0
        %1128 = vmatprep.subr.bf16.mxu0 0
        %1129 = vmatpush1.bf16.xpose.msra.mxu0 0
        %1130 = vmatprep.subr.bf16.mxu0 0
        %1131 = vmatpush1.bf16.xpose.msra.mxu0 0
        %1132 = vmatprep.subr.bf16.mxu0 0
        %1133 = vmatpush1.bf16.xpose.msra.mxu0 %v1116
        %1134 = vmatprep.subr.bf16.mxu0 0
        %1135 = vmatpush2.bf16.xpose.msra.mxu0 0
        %1136 = vmatprep.subr.bf16.mxu0 0
        %1137 = vmatpush2.bf16.xpose.msra.mxu0 0
        %1138 = vmatprep.subr.bf16.mxu0 0
        %1139 = vmatpush2.bf16.xpose.msra.mxu0 0
        %1140 = vmatprep.subr.bf16.mxu0 0
        %1141 = vmatpush2.bf16.xpose.msra.mxu0 0
        %1142 = vmatprep.subr.bf16.mxu0 0
        %1143 = vmatpush2.bf16.xpose.msra.mxu0 0
        %1144 = vmatprep.subr.bf16.mxu0 0
        %1145 = vmatpush2.bf16.xpose.msra.mxu0 0
        %1146 = vmatprep.subr.bf16.mxu0 0
        %1147 = vmatpush2.bf16.xpose.msra.mxu0 0
        %1148 = vmatprep.subr.bf16.mxu0 0
        %1149 = vmatpush2.bf16.xpose.msra.mxu0 0
        %1150 = vmatprep.mubr.bf16.mxu0 0
        %1151 = vmatmul.mubr.bf16.gmra.mxu0 %v1113
        %v1152 = vpop.f32.mrf.mxu0
        %v1153 = vadd.f32 0.0, %v1152
        %v1154 = vpop.f32.mrf.mxu0
        %v1155 = vpop.f32.mrf.mxu0
        %v1156 = vpop.f32.mrf.mxu0
        %1157 = vdwg.mxu0
        %v1159 = vsel %vm1065, %v752, 0
        %v1162 = vsel %vm1065, %v911, 0
        %1164 = vmatprep.subr.bf16.mxu0 0
        %1165 = vmatpush1.bf16.xpose.msra.mxu0 0
        %1166 = vmatprep.subr.bf16.mxu0 0
        %1167 = vmatpush1.bf16.xpose.msra.mxu0 0
        %1168 = vmatprep.subr.bf16.mxu0 0
        %1169 = vmatpush1.bf16.xpose.msra.mxu0 0
        %1170 = vmatprep.subr.bf16.mxu0 0
        %1171 = vmatpush1.bf16.xpose.msra.mxu0 0
        %1172 = vmatprep.subr.bf16.mxu0 0
        %1173 = vmatpush1.bf16.xpose.msra.mxu0 0
        %1174 = vmatprep.subr.bf16.mxu0 0
        %1175 = vmatpush1.bf16.xpose.msra.mxu0 0
        %1176 = vmatprep.subr.bf16.mxu0 0
        %1177 = vmatpush1.bf16.xpose.msra.mxu0 0
        %1178 = vmatprep.subr.bf16.mxu0 0
        %1179 = vmatpush1.bf16.xpose.msra.mxu0 %v1162
        %1180 = vmatprep.subr.bf16.mxu0 0
        %1181 = vmatpush2.bf16.xpose.msra.mxu0 0
        %1182 = vmatprep.subr.bf16.mxu0 0
        %1183 = vmatpush2.bf16.xpose.msra.mxu0 0
        %1184 = vmatprep.subr.bf16.mxu0 0
        %1185 = vmatpush2.bf16.xpose.msra.mxu0 0
        %1186 = vmatprep.subr.bf16.mxu0 0
        %1187 = vmatpush2.bf16.xpose.msra.mxu0 0
        %1188 = vmatprep.subr.bf16.mxu0 0
        %1189 = vmatpush2.bf16.xpose.msra.mxu0 0
        %1190 = vmatprep.subr.bf16.mxu0 0
        %1191 = vmatpush2.bf16.xpose.msra.mxu0 0
        %1192 = vmatprep.subr.bf16.mxu0 0
        %1193 = vmatpush2.bf16.xpose.msra.mxu0 0
        %1194 = vmatprep.subr.bf16.mxu0 0
        %1195 = vmatpush2.bf16.xpose.msra.mxu0 0
        %1196 = vmatprep.mubr.bf16.mxu0 0
        %1197 = vmatmul.mubr.bf16.gmra.mxu0 %v1159
        %v1198 = vpop.f32.mrf.mxu0
        %v1199 = vadd.f32 0.0, %v1198
        %v1200 = vpop.f32.mrf.mxu0
        %v1201 = vpop.f32.mrf.mxu0
        %v1202 = vpop.f32.mrf.mxu0
        %1203 = vdwg.mxu0
        %v1205 = vsel %vm1065, %v753, 0
        %v1208 = vsel %vm1065, %v912, 0
        %1210 = vmatprep.subr.bf16.mxu0 0
        %1211 = vmatpush1.bf16.xpose.msra.mxu0 0
        %1212 = vmatprep.subr.bf16.mxu0 0
        %1213 = vmatpush1.bf16.xpose.msra.mxu0 0
        %1214 = vmatprep.subr.bf16.mxu0 0
        %1215 = vmatpush1.bf16.xpose.msra.mxu0 0
        %1216 = vmatprep.subr.bf16.mxu0 0
        %1217 = vmatpush1.bf16.xpose.msra.mxu0 0
        %1218 = vmatprep.subr.bf16.mxu0 0
        %1219 = vmatpush1.bf16.xpose.msra.mxu0 0
        %1220 = vmatprep.subr.bf16.mxu0 0
        %1221 = vmatpush1.bf16.xpose.msra.mxu0 0
        %1222 = vmatprep.subr.bf16.mxu0 0
        %1223 = vmatpush1.bf16.xpose.msra.mxu0 0
        %1224 = vmatprep.subr.bf16.mxu0 0
        %1225 = vmatpush1.bf16.xpose.msra.mxu0 %v1208
        %1226 = vmatprep.subr.bf16.mxu0 0
        %1227 = vmatpush2.bf16.xpose.msra.mxu0 0
        %1228 = vmatprep.subr.bf16.mxu0 0
        %1229 = vmatpush2.bf16.xpose.msra.mxu0 0
        %1230 = vmatprep.subr.bf16.mxu0 0
        %1231 = vmatpush2.bf16.xpose.msra.mxu0 0
        %1232 = vmatprep.subr.bf16.mxu0 0
        %1233 = vmatpush2.bf16.xpose.msra.mxu0 0
        %1234 = vmatprep.subr.bf16.mxu0 0
        %1235 = vmatpush2.bf16.xpose.msra.mxu0 0
        %1236 = vmatprep.subr.bf16.mxu0 0
        %1237 = vmatpush2.bf16.xpose.msra.mxu0 0
        %1238 = vmatprep.subr.bf16.mxu0 0
        %1239 = vmatpush2.bf16.xpose.msra.mxu0 0
        %1240 = vmatprep.subr.bf16.mxu0 0
        %1241 = vmatpush2.bf16.xpose.msra.mxu0 0
        %1242 = vmatprep.mubr.bf16.mxu0 0
        %1243 = vmatmul.mubr.bf16.gmra.mxu0 %v1205
        %v1244 = vpop.f32.mrf.mxu0
        %v1245 = vadd.f32 0.0, %v1244
        %v1246 = vpop.f32.mrf.mxu0
        %v1247 = vpop.f32.mrf.mxu0
        %v1248 = vpop.f32.mrf.mxu0
        %1249 = vdwg.mxu0
        %v1250 = vsel %vm1065, %v1107, -inf
        %1251 = vmax.xlane.f32.xlu0 %v1250
        %v1252 = vpop.xlane.xlu0 %1251
        %v1253 = vsel %vm1065, %v1153, -inf
        %1254 = vmax.xlane.f32.xlu0 %v1253
        %v1255 = vpop.xlane.xlu0 %1254
        %v1256 = vsel %vm1065, %v1199, -inf
        %1257 = vmax.xlane.f32.xlu0 %v1256
        %v1258 = vpop.xlane.xlu0 %1257
        %v1259 = vsel %vm1065, %v1245, -inf
        %1260 = vmax.xlane.f32.xlu0 %v1259
        %v1261 = vpop.xlane.xlu0 %1260
        %v1262 = vsub.f32 %v1107, %v1252
        %v1263 = vsub.f32 %v1153, %v1255
        %v1264 = vsub.f32 %v1199, %v1258
        %v1265 = vsub.f32 %v1245, %v1261
        %v1266 = vmul.f32 %v1262, 1.442695
        %v1267 = vpow.pop %v1266
        %v1268 = vmul.f32 %v1263, 1.442695
        %v1269 = vpow.pop %v1268
        %v1270 = vmul.f32 %v1264, 1.442695
        %v1271 = vpow.pop %v1270
        %v1272 = vmul.f32 %v1265, 1.442695
        %v1273 = vpow.pop %v1272
        %v1274 = vsel %vm1065, %v1267, 0.0
        %1275 = vadd.xlane.f32.xlu0 %v1274
        %v1276 = vpop.xlane.xlu0 %1275
        %v1277 = vsel %vm1065, %v1269, 0.0
        %1278 = vadd.xlane.f32.xlu0 %v1277
        %v1279 = vpop.xlane.xlu0 %1278
        %v1280 = vsel %vm1065, %v1271, 0.0
        %1281 = vadd.xlane.f32.xlu0 %v1280
        %v1282 = vpop.xlane.xlu0 %1281
        %v1283 = vsel %vm1065, %v1273, 0.0
        %1284 = vadd.xlane.f32.xlu0 %v1283
        %v1285 = vpop.xlane.xlu0 %1284
        %v1286 = vpack.c.bf16 %v1267, %v1267
        %v1287 = vpack.c.bf16 %v1269, %v1269
        %v1288 = vpack.c.bf16 %v1271, %v1271
        %v1289 = vpack.c.bf16 %v1273, %v1273
        %v1291 = vsel %vm1065, %v1286, 0
        %vm1293 = vcmask 1043456
        %v1295 = vsel %vm1293, %v1061, 0
        %1297 = vmatprep.subr.bf16.mxu0 0
        %1298 = vmatpush1.bf16.msra.mxu0 0
        %1299 = vmatprep.subr.bf16.mxu0 0
        %1300 = vmatpush1.bf16.msra.mxu0 0
        %1301 = vmatprep.subr.bf16.mxu0 0
        %1302 = vmatpush1.bf16.msra.mxu0 0
        %1303 = vmatprep.subr.bf16.mxu0 0
        %1304 = vmatpush1.bf16.msra.mxu0 0
        %1305 = vmatprep.subr.bf16.mxu0 0
        %1306 = vmatpush1.bf16.msra.mxu0 0
        %1307 = vmatprep.subr.bf16.mxu0 0
        %1308 = vmatpush1.bf16.msra.mxu0 0
        %1309 = vmatprep.subr.bf16.mxu0 0
        %1310 = vmatpush1.bf16.msra.mxu0 0
        %1311 = vmatprep.subr.bf16.mxu0 0
        %1312 = vmatpush1.bf16.msra.mxu0 %v1295
        %1313 = vmatprep.subr.bf16.mxu0 0
        %1314 = vmatpush2.bf16.msra.mxu0 0
        %1315 = vmatprep.subr.bf16.mxu0 0
        %1316 = vmatpush2.bf16.msra.mxu0 0
        %1317 = vmatprep.subr.bf16.mxu0 0
        %1318 = vmatpush2.bf16.msra.mxu0 0
        %1319 = vmatprep.subr.bf16.mxu0 0
        %1320 = vmatpush2.bf16.msra.mxu0 0
        %1321 = vmatprep.subr.bf16.mxu0 0
        %1322 = vmatpush2.bf16.msra.mxu0 0
        %1323 = vmatprep.subr.bf16.mxu0 0
        %1324 = vmatpush2.bf16.msra.mxu0 0
        %1325 = vmatprep.subr.bf16.mxu0 0
        %1326 = vmatpush2.bf16.msra.mxu0 0
        %1327 = vmatprep.subr.bf16.mxu0 0
        %1328 = vmatpush2.bf16.msra.mxu0 0
        %1329 = vmatprep.mubr.bf16.mxu0 0
        %1330 = vmatmul.mubr.bf16.gmra.mxu0 %v1291
        %v1331 = vpop.f32.mrf.mxu0
        %v1332 = vadd.f32 0.0, %v1331
        %v1333 = vpop.f32.mrf.mxu0
        %v1334 = vpop.f32.mrf.mxu0
        %v1335 = vpop.f32.mrf.mxu0
        %1336 = vdwg.mxu0
        %v1338 = vsel %vm1065, %v1287, 0
        %v1341 = vsel %vm1293, %v1062, 0
        %1343 = vmatprep.subr.bf16.mxu0 0
        %1344 = vmatpush1.bf16.msra.mxu0 0
        %1345 = vmatprep.subr.bf16.mxu0 0
        %1346 = vmatpush1.bf16.msra.mxu0 0
        %1347 = vmatprep.subr.bf16.mxu0 0
        %1348 = vmatpush1.bf16.msra.mxu0 0
        %1349 = vmatprep.subr.bf16.mxu0 0
        %1350 = vmatpush1.bf16.msra.mxu0 0
        %1351 = vmatprep.subr.bf16.mxu0 0
        %1352 = vmatpush1.bf16.msra.mxu0 0
        %1353 = vmatprep.subr.bf16.mxu0 0
        %1354 = vmatpush1.bf16.msra.mxu0 0
        %1355 = vmatprep.subr.bf16.mxu0 0
        %1356 = vmatpush1.bf16.msra.mxu0 0
        %1357 = vmatprep.subr.bf16.mxu0 0
        %1358 = vmatpush1.bf16.msra.mxu0 %v1341
        %1359 = vmatprep.subr.bf16.mxu0 0
        %1360 = vmatpush2.bf16.msra.mxu0 0
        %1361 = vmatprep.subr.bf16.mxu0 0
        %1362 = vmatpush2.bf16.msra.mxu0 0
        %1363 = vmatprep.subr.bf16.mxu0 0
        %1364 = vmatpush2.bf16.msra.mxu0 0
        %1365 = vmatprep.subr.bf16.mxu0 0
        %1366 = vmatpush2.bf16.msra.mxu0 0
        %1367 = vmatprep.subr.bf16.mxu0 0
        %1368 = vmatpush2.bf16.msra.mxu0 0
        %1369 = vmatprep.subr.bf16.mxu0 0
        %1370 = vmatpush2.bf16.msra.mxu0 0
        %1371 = vmatprep.subr.bf16.mxu0 0
        %1372 = vmatpush2.bf16.msra.mxu0 0
        %1373 = vmatprep.subr.bf16.mxu0 0
        %1374 = vmatpush2.bf16.msra.mxu0 0
        %1375 = vmatprep.mubr.bf16.mxu0 0
        %1376 = vmatmul.mubr.bf16.gmra.mxu0 %v1338
        %v1377 = vpop.f32.mrf.mxu0
        %v1378 = vadd.f32 0.0, %v1377
        %v1379 = vpop.f32.mrf.mxu0
        %v1380 = vpop.f32.mrf.mxu0
        %v1381 = vpop.f32.mrf.mxu0
        %1382 = vdwg.mxu0
        %v1384 = vsel %vm1065, %v1288, 0
        %v1387 = vsel %vm1293, %v1063, 0
        %1389 = vmatprep.subr.bf16.mxu0 0
        %1390 = vmatpush1.bf16.msra.mxu0 0
        %1391 = vmatprep.subr.bf16.mxu0 0
        %1392 = vmatpush1.bf16.msra.mxu0 0
        %1393 = vmatprep.subr.bf16.mxu0 0
        %1394 = vmatpush1.bf16.msra.mxu0 0
        %1395 = vmatprep.subr.bf16.mxu0 0
        %1396 = vmatpush1.bf16.msra.mxu0 0
        %1397 = vmatprep.subr.bf16.mxu0 0
        %1398 = vmatpush1.bf16.msra.mxu0 0
        %1399 = vmatprep.subr.bf16.mxu0 0
        %1400 = vmatpush1.bf16.msra.mxu0 0
        %1401 = vmatprep.subr.bf16.mxu0 0
        %1402 = vmatpush1.bf16.msra.mxu0 0
        %1403 = vmatprep.subr.bf16.mxu0 0
        %1404 = vmatpush1.bf16.msra.mxu0 %v1387
        %1405 = vmatprep.subr.bf16.mxu0 0
        %1406 = vmatpush2.bf16.msra.mxu0 0
        %1407 = vmatprep.subr.bf16.mxu0 0
        %1408 = vmatpush2.bf16.msra.mxu0 0
        %1409 = vmatprep.subr.bf16.mxu0 0
        %1410 = vmatpush2.bf16.msra.mxu0 0
        %1411 = vmatprep.subr.bf16.mxu0 0
        %1412 = vmatpush2.bf16.msra.mxu0 0
        %1413 = vmatprep.subr.bf16.mxu0 0
        %1414 = vmatpush2.bf16.msra.mxu0 0
        %1415 = vmatprep.subr.bf16.mxu0 0
        %1416 = vmatpush2.bf16.msra.mxu0 0
        %1417 = vmatprep.subr.bf16.mxu0 0
        %1418 = vmatpush2.bf16.msra.mxu0 0
        %1419 = vmatprep.subr.bf16.mxu0 0
        %1420 = vmatpush2.bf16.msra.mxu0 0
        %1421 = vmatprep.mubr.bf16.mxu0 0
        %1422 = vmatmul.mubr.bf16.gmra.mxu0 %v1384
        %v1423 = vpop.f32.mrf.mxu0
        %v1424 = vadd.f32 0.0, %v1423
        %v1425 = vpop.f32.mrf.mxu0
        %v1426 = vpop.f32.mrf.mxu0
        %v1427 = vpop.f32.mrf.mxu0
        %1428 = vdwg.mxu0
        %v1430 = vsel %vm1065, %v1289, 0
        %v1433 = vsel %vm1293, %v1064, 0
        %1435 = vmatprep.subr.bf16.mxu0 0
        %1436 = vmatpush1.bf16.msra.mxu0 0
        %1437 = vmatprep.subr.bf16.mxu0 0
        %1438 = vmatpush1.bf16.msra.mxu0 0
        %1439 = vmatprep.subr.bf16.mxu0 0
        %1440 = vmatpush1.bf16.msra.mxu0 0
        %1441 = vmatprep.subr.bf16.mxu0 0
        %1442 = vmatpush1.bf16.msra.mxu0 0
        %1443 = vmatprep.subr.bf16.mxu0 0
        %1444 = vmatpush1.bf16.msra.mxu0 0
        %1445 = vmatprep.subr.bf16.mxu0 0
        %1446 = vmatpush1.bf16.msra.mxu0 0
        %1447 = vmatprep.subr.bf16.mxu0 0
        %1448 = vmatpush1.bf16.msra.mxu0 0
        %1449 = vmatprep.subr.bf16.mxu0 0
        %1450 = vmatpush1.bf16.msra.mxu0 %v1433
        %1451 = vmatprep.subr.bf16.mxu0 0
        %1452 = vmatpush2.bf16.msra.mxu0 0
        %1453 = vmatprep.subr.bf16.mxu0 0
        %1454 = vmatpush2.bf16.msra.mxu0 0
        %1455 = vmatprep.subr.bf16.mxu0 0
        %1456 = vmatpush2.bf16.msra.mxu0 0
        %1457 = vmatprep.subr.bf16.mxu0 0
        %1458 = vmatpush2.bf16.msra.mxu0 0
        %1459 = vmatprep.subr.bf16.mxu0 0
        %1460 = vmatpush2.bf16.msra.mxu0 0
        %1461 = vmatprep.subr.bf16.mxu0 0
        %1462 = vmatpush2.bf16.msra.mxu0 0
        %1463 = vmatprep.subr.bf16.mxu0 0
        %1464 = vmatpush2.bf16.msra.mxu0 0
        %1465 = vmatprep.subr.bf16.mxu0 0
        %1466 = vmatpush2.bf16.msra.mxu0 0
        %1467 = vmatprep.mubr.bf16.mxu0 0
        %1468 = vmatmul.mubr.bf16.gmra.mxu0 %v1430
        %v1469 = vpop.f32.mrf.mxu0
        %v1470 = vadd.f32 0.0, %v1469
        %v1471 = vpop.f32.mrf.mxu0
        %v1472 = vpop.f32.mrf.mxu0
        %v1473 = vpop.f32.mrf.mxu0
        %1474 = vdwg.mxu0
        %v1475 = vrcp.pop %v1276
        %v1476 = vrcp.pop %v1279
        %v1477 = vrcp.pop %v1282
        %v1478 = vrcp.pop %v1285
        %v1479 = vmul.f32 %v1332, %v1475
        %v1480 = vmul.f32 %v1378, %v1476
        %v1481 = vmul.f32 %v1424, %v1477
        %v1482 = vmul.f32 %v1470, %v1478
        %v1483 = vcombine.low %v1479, %v1481
        %v1484 = vcombine.high %v1479, %v1481
        %v1486 = vunpack.c.l.s4 1983009808
        %v1487 = vunpack.c.0.s8 %v1486
        %v1488 = vlaneseq
        %v1489 = vshrl.u32 %v1488, 7
        %v1490 = vsub.s32 %v1487, %v1489
        %v1491 = vrot.slane %v1483, %v1490
        %v1493 = vunpack.c.l.s4 1983009808
        %v1494 = vunpack.c.0.s8 %v1493
        %v1495 = vlaneseq
        %v1496 = vshrl.u32 %v1495, 7
        %v1497 = vsub.s32 %v1494, %v1496
        %v1498 = vrot.slane %v1484, %v1497
        %v1499 = vcombine.low %v1480, %v1482
        %v1500 = vcombine.high %v1480, %v1482
        %v1502 = vunpack.c.l.s4 1983009808
        %v1503 = vunpack.c.0.s8 %v1502
        %v1504 = vlaneseq
        %v1505 = vshrl.u32 %v1504, 7
        %v1506 = vsub.s32 %v1503, %v1505
        %v1507 = vrot.slane %v1499, %v1506
        %v1509 = vunpack.c.l.s4 1983009808
        %v1510 = vunpack.c.0.s8 %v1509
        %v1511 = vlaneseq
        %v1512 = vshrl.u32 %v1511, 7
        %v1513 = vsub.s32 %v1510, %v1512
        %v1514 = vrot.slane %v1500, %v1513
        %v1515 = vcombine.low %v1491, %v1507
        %v1516 = vcombine.high %v1491, %v1507
        %v1518 = vunpack.c.l.s4 1934713408
        %v1519 = vunpack.c.0.s8 %v1518
        %v1520 = vlaneseq
        %v1521 = vshrl.u32 %v1520, 7
        %v1522 = vsub.s32 %v1519, %v1521
        %v1523 = vrot.slane %v1515, %v1522
        %v1525 = vunpack.c.l.s4 1934713408
        %v1526 = vunpack.c.0.s8 %v1525
        %v1527 = vlaneseq
        %v1528 = vshrl.u32 %v1527, 7
        %v1529 = vsub.s32 %v1526, %v1528
        %v1530 = vrot.slane %v1516, %v1529
        %v1531 = vcombine.low %v1498, %v1514
        %v1532 = vcombine.high %v1498, %v1514
        %v1534 = vunpack.c.l.s4 1934713408
        %v1535 = vunpack.c.0.s8 %v1534
        %v1536 = vlaneseq
        %v1537 = vshrl.u32 %v1536, 7
        %v1538 = vsub.s32 %v1535, %v1537
        %v1539 = vrot.slane %v1531, %v1538
        %v1541 = vunpack.c.l.s4 1934713408
        %v1542 = vunpack.c.0.s8 %v1541
        %v1543 = vlaneseq
        %v1544 = vshrl.u32 %v1543, 7
        %v1545 = vsub.s32 %v1542, %v1544
        %v1546 = vrot.slane %v1532, %v1545
        %v1547 = vcombine.high %v1523, 0.0
        %v1548 = vcombine.high %v1530, 0.0
        %v1549 = vcombine.high %v1539, 0.0
        %v1550 = vcombine.high %v1546, 0.0
        %v1551 = vcombine.low %v1523, %v1530
        %v1553 = vunpack.c.l.s4 1983009808
        %v1554 = vunpack.c.0.s8 %v1553
        %v1555 = vlaneseq
        %v1556 = vshrl.u32 %v1555, 7
        %v1557 = vsub.s32 %v1554, %v1556
        %v1558 = vrot.slane %v1551, %v1557
        %v1559 = vcombine.low %v1547, %v1548
        %v1561 = vunpack.c.l.s4 1983009808
        %v1562 = vunpack.c.0.s8 %v1561
        %v1563 = vlaneseq
        %v1564 = vshrl.u32 %v1563, 7
        %v1565 = vsub.s32 %v1562, %v1564
        %v1566 = vrot.slane %v1559, %v1565
        %v1567 = vcombine.low %v1539, %v1546
        %v1569 = vunpack.c.l.s4 1983009808
        %v1570 = vunpack.c.0.s8 %v1569
        %v1571 = vlaneseq
        %v1572 = vshrl.u32 %v1571, 7
        %v1573 = vsub.s32 %v1570, %v1572
        %v1574 = vrot.slane %v1567, %v1573
        %v1575 = vcombine.low %v1549, %v1550
        %v1577 = vunpack.c.l.s4 1983009808
        %v1578 = vunpack.c.0.s8 %v1577
        %v1579 = vlaneseq
        %v1580 = vshrl.u32 %v1579, 7
        %v1581 = vsub.s32 %v1578, %v1580
        %v1582 = vrot.slane %v1575, %v1581
        %v1583 = vcombine.low %v1558, %v1566
        %v1584 = vcombine.high %v1558, %v1566
        %v1586 = vunpack.c.l.s4 1934713408
        %v1587 = vunpack.c.0.s8 %v1586
        %v1588 = vlaneseq
        %v1589 = vshrl.u32 %v1588, 7
        %v1590 = vsub.s32 %v1587, %v1589
        %v1591 = vrot.slane %v1583, %v1590
        %v1593 = vunpack.c.l.s4 1934713408
        %v1594 = vunpack.c.0.s8 %v1593
        %v1595 = vlaneseq
        %v1596 = vshrl.u32 %v1595, 7
        %v1597 = vsub.s32 %v1594, %v1596
        %v1598 = vrot.slane %v1584, %v1597
        %v1599 = vcombine.low %v1574, %v1582
        %v1600 = vcombine.high %v1574, %v1582
        %v1602 = vunpack.c.l.s4 1934713408
        %v1603 = vunpack.c.0.s8 %v1602
        %v1604 = vlaneseq
        %v1605 = vshrl.u32 %v1604, 7
        %v1606 = vsub.s32 %v1603, %v1605
        %v1607 = vrot.slane %v1599, %v1606
        %v1609 = vunpack.c.l.s4 1934713408
        %v1610 = vunpack.c.0.s8 %v1609
        %v1611 = vlaneseq
        %v1612 = vshrl.u32 %v1611, 7
        %v1613 = vsub.s32 %v1610, %v1612
        %v1614 = vrot.slane %v1600, %v1613
        %v1615 = vcombine.low %v1591, %v1607
        %v1616 = vcombine.high %v1591, %v1607
        %v1617 = vcombine.low %v1598, %v1614
        %v1618 = vcombine.high %v1598, %v1614
        %1620 = vrot.lane.b32.xlu0 %v1616, 8
        %v1621 = vpop.permute.xlu0 %1620
        %1624 = vrot.lane.b32.xlu0 %v1617, 16
        %v1625 = vpop.permute.xlu0 %1624
        %1628 = vrot.lane.b32.xlu0 %v1618, 24
        %v1629 = vpop.permute.xlu0 %1628
        %v1631 = vsel %vm1065, %v1615, %v1621
        %vm1632 = vcmask 130048
        %v1633 = vsel %vm1632, %v1631, %v1625
        %vm1634 = vcmask 195584
        %v1635 = vsel %vm1634, %v1633, %v1629
        %v1636 = vpack.c.bf16 %v1635, %v1635
        %v1637 = vld [vmem:[%s5] sm:$0xf]
        %v1638 = vld [vmem:[%s5 + $0x4] sm:$0xf]
        %v1639 = vld [vmem:[%s5 + $0x8] sm:$0xf]
        %v1640 = vld [vmem:[%s5 + $0xc] sm:$0xf]
        %v1641 = vld [vmem:[%s6] sm:$0x1]
        %v1643 = vlaneseq
        %v1644 = vshrl.u32 %v1643, 7
        %v1645 = vsub.s32 0, %v1644
        %v1646 = vrot.slane %v1641, %v1645
        %v1652 = vunpack.c.l.b16 %v1637
        %v1653 = vunpack.c.l.b16 %v1638
        %v1654 = vunpack.c.l.b16 %v1639
        %v1655 = vunpack.c.l.b16 %v1640
        %v1656 = vpack.c.b16 %v1653, %v1652
        %v1657 = vpack.c.b16 %v1655, %v1654
        %v1661 = vsel %vm507, %v1636, 0
        %1663 = vmatprep.subr.bf16.mxu0 0
        %1664 = vmatpush1.bf16.msra.mxu0 0
        %1665 = vmatprep.subr.bf16.mxu0 0
        %1666 = vmatpush1.bf16.msra.mxu0 0
        %1667 = vmatprep.subr.bf16.mxu0 0
        %1668 = vmatpush1.bf16.msra.mxu0 0
        %1669 = vmatprep.subr.bf16.mxu0 0
        %1670 = vmatpush1.bf16.msra.mxu0 0
        %1671 = vmatprep.subr.bf16.mxu0 0
        %1672 = vmatpush1.bf16.msra.mxu0 0
        %1673 = vmatprep.subr.bf16.mxu0 0
        %1674 = vmatpush1.bf16.msra.mxu0 0
        %1675 = vmatprep.subr.bf16.mxu0 0
        %1676 = vmatpush1.bf16.msra.mxu0 %v1657
        %1677 = vmatprep.subr.bf16.mxu0 0
        %1678 = vmatpush1.bf16.msra.mxu0 %v1656
        %1679 = vmatprep.subr.bf16.mxu0 0
        %1680 = vmatpush2.bf16.msra.mxu0 0
        %1681 = vmatprep.subr.bf16.mxu0 0
        %1682 = vmatpush2.bf16.msra.mxu0 0
        %1683 = vmatprep.subr.bf16.mxu0 0
        %1684 = vmatpush2.bf16.msra.mxu0 0
        %1685 = vmatprep.subr.bf16.mxu0 0
        %1686 = vmatpush2.bf16.msra.mxu0 0
        %1687 = vmatprep.subr.bf16.mxu0 0
        %1688 = vmatpush2.bf16.msra.mxu0 0
        %1689 = vmatprep.subr.bf16.mxu0 0
        %1690 = vmatpush2.bf16.msra.mxu0 0
        %1691 = vmatprep.subr.bf16.mxu0 0
        %1692 = vmatpush2.bf16.msra.mxu0 0
        %1693 = vmatprep.subr.bf16.mxu0 0
        %1694 = vmatpush2.bf16.msra.mxu0 0
        %1695 = vmatprep.mubr.bf16.mxu0 0
        %1696 = vmatmul.mubr.bf16.gmra.mxu0 %v1661
        %v1697 = vpop.f32.mrf.mxu0
        %v1698 = vadd.f32 %v1646, %v1697
        %v1699 = vpop.f32.mrf.mxu0
        %v1700 = vpop.f32.mrf.mxu0
        %v1701 = vpop.f32.mrf.mxu0
        %1702 = vdwg.mxu0
        %v1703 = vadd.f32 %v1698, %v504
        %v1704 = vld [vmem:[#allocation2] sm:$0x1]
        %v1705 = vld [vmem:[#allocation5] sm:$0x1]
        %v1706 = vsel %vm507, %v1703, 0.0
        %1707 = vadd.xlane.f32.xlu0 %v1706
        %v1708 = vpop.xlane.xlu0 %1707
        %v1709 = vmul.f32 %v1708, %v511
        %v1710 = vsub.f32 %v1703, %v1709
        %v1711 = vmul.f32 %v1710, %v1710
        %v1712 = vsel %vm507, %v1711, 0.0
        %1713 = vadd.xlane.f32.xlu0 %v1712
        %v1714 = vpop.xlane.xlu0 %1713
        %v1715 = vmul.f32 %v1714, %v511
        %v1716 = vadd.f32 %v1715, 1e-05
        %v1717 = vrsqrt.pop %v1716
        %v1718 = vmul.f32 %v1710, %v1717
        %v1720 = vlaneseq
        %v1721 = vshrl.u32 %v1720, 7
        %v1722 = vsub.s32 0, %v1721
        %v1723 = vrot.slane %v1704, %v1722
        %v1725 = vmul.f32 %v1718, %v1723
        %v1727 = vlaneseq
        %v1728 = vshrl.u32 %v1727, 7
        %v1729 = vsub.s32 0, %v1728
        %v1730 = vrot.slane %v1705, %v1729
        %v1732 = vadd.f32 %v1725, %v1730
        %v1733 = vpack.c.bf16 %v1732, %v1732
        %v1734 = vld [vmem:[#allocation7] sm:$0xf]
        %v1735 = vld [vmem:[#allocation7 + $0x4] sm:$0xf]
        %v1736 = vld [vmem:[#allocation7 + $0x8] sm:$0xf]
        %v1737 = vld [vmem:[#allocation7 + $0xc] sm:$0xf]
        %v1738 = vld [vmem:[#allocation8] sm:$0x1]
        %v1740 = vlaneseq
        %v1741 = vshrl.u32 %v1740, 7
        %v1742 = vsub.s32 0, %v1741
        %v1743 = vrot.slane %v1738, %v1742
        %v1749 = vunpack.c.l.b16 %v1734
        %v1750 = vunpack.c.l.b16 %v1735
        %v1751 = vunpack.c.l.b16 %v1736
        %v1752 = vunpack.c.l.b16 %v1737
        %v1753 = vpack.c.b16 %v1750, %v1749
        %v1754 = vpack.c.b16 %v1752, %v1751
        %v1758 = vsel %vm507, %v1733, 0
        %1760 = vmatprep.subr.bf16.mxu0 0
        %1761 = vmatpush1.bf16.msra.mxu0 0
        %1762 = vmatprep.subr.bf16.mxu0 0
        %1763 = vmatpush1.bf16.msra.mxu0 0
        %1764 = vmatprep.subr.bf16.mxu0 0
        %1765 = vmatpush1.bf16.msra.mxu0 0
        %1766 = vmatprep.subr.bf16.mxu0 0
        %1767 = vmatpush1.bf16.msra.mxu0 0
        %1768 = vmatprep.subr.bf16.mxu0 0
        %1769 = vmatpush1.bf16.msra.mxu0 0
        %1770 = vmatprep.subr.bf16.mxu0 0
        %1771 = vmatpush1.bf16.msra.mxu0 0
        %1772 = vmatprep.subr.bf16.mxu0 0
        %1773 = vmatpush1.bf16.msra.mxu0 %v1754
        %1774 = vmatprep.subr.bf16.mxu0 0
        %1775 = vmatpush1.bf16.msra.mxu0 %v1753
        %1776 = vmatprep.subr.bf16.mxu0 0
        %1777 = vmatpush2.bf16.msra.mxu0 0
        %1778 = vmatprep.subr.bf16.mxu0 0
        %1779 = vmatpush2.bf16.msra.mxu0 0
        %1780 = vmatprep.subr.bf16.mxu0 0
        %1781 = vmatpush2.bf16.msra.mxu0 0
        %1782 = vmatprep.subr.bf16.mxu0 0
        %1783 = vmatpush2.bf16.msra.mxu0 0
        %1784 = vmatprep.subr.bf16.mxu0 0
        %1785 = vmatpush2.bf16.msra.mxu0 0
        %1786 = vmatprep.subr.bf16.mxu0 0
        %1787 = vmatpush2.bf16.msra.mxu0 0
        %1788 = vmatprep.subr.bf16.mxu0 0
        %1789 = vmatpush2.bf16.msra.mxu0 0
        %1790 = vmatprep.subr.bf16.mxu0 0
        %1791 = vmatpush2.bf16.msra.mxu0 0
        %1792 = vmatprep.mubr.bf16.mxu0 0
        %1793 = vmatmul.mubr.bf16.gmra.mxu0 %v1758
        %v1794 = vpop.f32.mrf.mxu0
        %v1795 = vadd.f32 %v1743, %v1794
        %v1796 = vpop.f32.mrf.mxu0
        %v1797 = vpop.f32.mrf.mxu0
        %v1798 = vpop.f32.mrf.mxu0
        %1799 = vdwg.mxu0
        %v1800 = vmul.f32 %v1795, 0.5
        %v1801 = vmul.f32 %v1795, 0.70710677
        %v1802 = verf.f32.pop %v1801
        %v1803 = vadd.f32 %v1802, 1.0
        %v1804 = vmul.f32 %v1800, %v1803
        %v1805 = vpack.c.bf16 %v1804, %v1804
        %v1806 = vld [vmem:[%s11] sm:$0xf]
        %v1807 = vld [vmem:[%s11 + $0x4] sm:$0xf]
        %v1808 = vld [vmem:[%s11 + $0x8] sm:$0xf]
        %v1809 = vld [vmem:[%s11 + $0xc] sm:$0xf]
        %v1810 = vld [vmem:[%s11 + $0x10] sm:$0xf]
        %v1811 = vld [vmem:[%s11 + $0x14] sm:$0xf]
        %v1812 = vld [vmem:[%s11 + $0x18] sm:$0xf]
        %v1813 = vld [vmem:[%s11 + $0x1c] sm:$0xf]
        %v1814 = vld [vmem:[%s12] sm:$0x1]
        %v1816 = vlaneseq
        %v1817 = vshrl.u32 %v1816, 7
        %v1818 = vsub.s32 0, %v1817
        %v1819 = vrot.slane %v1814, %v1818
        %v1829 = vunpack.c.l.b16 %v1806
        %v1830 = vunpack.c.l.b16 %v1807
        %v1831 = vunpack.c.l.b16 %v1808
        %v1832 = vunpack.c.l.b16 %v1809
        %v1833 = vunpack.c.l.b16 %v1810
        %v1834 = vunpack.c.l.b16 %v1811
        %v1835 = vunpack.c.l.b16 %v1812
        %v1836 = vunpack.c.l.b16 %v1813
        %v1837 = vpack.c.b16 %v1830, %v1829
        %v1838 = vpack.c.b16 %v1832, %v1831
        %v1839 = vpack.c.b16 %v1834, %v1833
        %v1840 = vpack.c.b16 %v1836, %v1835
        %vm1845 = vcmask 523264
        %v1847 = vsel %vm1845, %v1805, 0
        %1849 = vmatprep.subr.bf16.mxu0 0
        %1850 = vmatpush1.bf16.msra.mxu0 0
        %1851 = vmatprep.subr.bf16.mxu0 0
        %1852 = vmatpush1.bf16.msra.mxu0 0
        %1853 = vmatprep.subr.bf16.mxu0 0
        %1854 = vmatpush1.bf16.msra.mxu0 0
        %1855 = vmatprep.subr.bf16.mxu0 0
        %1856 = vmatpush1.bf16.msra.mxu0 0
        %1857 = vmatprep.subr.bf16.mxu0 0
        %1858 = vmatpush1.bf16.msra.mxu0 %v1840
        %1859 = vmatprep.subr.bf16.mxu0 0
        %1860 = vmatpush1.bf16.msra.mxu0 %v1839
        %1861 = vmatprep.subr.bf16.mxu0 0
        %1862 = vmatpush1.bf16.msra.mxu0 %v1838
        %1863 = vmatprep.subr.bf16.mxu0 0
        %1864 = vmatpush1.bf16.msra.mxu0 %v1837
        %1865 = vmatprep.subr.bf16.mxu0 0
        %1866 = vmatpush2.bf16.msra.mxu0 0
        %1867 = vmatprep.subr.bf16.mxu0 0
        %1868 = vmatpush2.bf16.msra.mxu0 0
        %1869 = vmatprep.subr.bf16.mxu0 0
        %1870 = vmatpush2.bf16.msra.mxu0 0
        %1871 = vmatprep.subr.bf16.mxu0 0
        %1872 = vmatpush2.bf16.msra.mxu0 0
        %1873 = vmatprep.subr.bf16.mxu0 0
        %1874 = vmatpush2.bf16.msra.mxu0 0
        %1875 = vmatprep.subr.bf16.mxu0 0
        %1876 = vmatpush2.bf16.msra.mxu0 0
        %1877 = vmatprep.subr.bf16.mxu0 0
        %1878 = vmatpush2.bf16.msra.mxu0 0
        %1879 = vmatprep.subr.bf16.mxu0 0
        %1880 = vmatpush2.bf16.msra.mxu0 0
        %1881 = vmatprep.mubr.bf16.mxu0 0
        %1882 = vmatmul.mubr.bf16.gmra.mxu0 %v1847
        %v1883 = vpop.f32.mrf.mxu0
        %v1884 = vadd.f32 %v1819, %v1883
        %v1885 = vpop.f32.mrf.mxu0
        %v1886 = vpop.f32.mrf.mxu0
        %v1887 = vpop.f32.mrf.mxu0
        %1888 = vdwg.mxu0
        %v1889 = vadd.f32 %v1884, %v1703
        %1890 = vst.msk [vmem:[%s498] sm:$0xff] %vm507, %v1889
        %s1891 = sand.u32 %s330, 1
        %s1892 = scalar_lea.sflag [#allocation4], %s1891
        %s1893 = sand.u32 %s330, 1
        %s1894 = smul.addr %s1893, 8
        %s1895 = scalar_lea.vmem [#allocation10], %s1894
        // Predicated region
        $region89: #{tpu_custom_call.1} parent=71 // pred_check
          %p1896 = pneg %p340
        $region90: #{tpu_custom_call.1} parent=71 // pred_check_branch
          %1898 = sbr.rel (%p1896) target = $region92
        $region91: #{tpu_custom_call.1} parent=71 // pred_region
          %s1900 = ssub.s32 128, 128
          %1901 = vsyncadd %s1892, %s1900
          %s1902 = sadd.s32 %s35, %s34
          %s1903 = smul.addr %s1902, 128
          %s1904 = scalar_lea.hbm %s13, %s1903
          %s1906 = sshll.u32 %s1895, 4
          %s1907 = int_to_ptr.vmem [resolvable:$true] %s1906
          %1909 = dma.vmem_to_hbm [thread:$0]  %s1907, 128, %s1904, %s1892
        $region92: #{tpu_custom_call.1} parent=71 // pred_fallthru
          _
      $region72: #{tpu_custom_call.1} parent=5 // pred_fallthru
        _
      %p1910 = scmp.le.s32.totalorder 2, %s25
      // Predicated region
      $region93: #{tpu_custom_call.1} parent=5 // pred_check
        %p1911 = pneg %p1910
      $region94: #{tpu_custom_call.1} parent=5 // pred_check_branch
        %1913 = sbr.rel (%p1911) target = $region96
      $region95: #{tpu_custom_call.1} parent=5 // pred_region
        %s1914 = ssub.s32 %s25, 2
        // Predicated region
        $region97: #{tpu_custom_call.1} parent=95 // pred_check
          %p1915 = pneg %p346
        $region98: #{tpu_custom_call.1} parent=95 // pred_check_branch
          %1917 = sbr.rel (%p1915) target = $region100
        $region99: #{tpu_custom_call.1} parent=95 // pred_region
          %s1918 = sand.u32 %s331, 1
          %s1919 = scalar_lea.sflag [#allocation4], %s1918
          %s1920 = sand.u32 %s331, 1
          %s1921 = smul.addr %s1920, 8
          %s1922 = scalar_lea.vmem [#allocation10], %s1921
          %1923 = dma.done %s1919, 128
        $region100: #{tpu_custom_call.1} parent=95 // pred_fallthru
          _
      $region96: #{tpu_custom_call.1} parent=5 // pred_fallthru
        _
    $region6: #{tpu_custom_call.1} parent=1 // loop_footer
      %s29 = sadd.s32 1, %s25
    $region7: #{tpu_custom_call.1} parent=1 // loop_footer_branch
      %24 = sbr.rel target = $region3
    $region8: #{tpu_custom_call.1} parent=1 // loop_exit
      _
    %1924 = vsyncpa [#allocation3], 1
    %s1925 = scalar_lea.sflag [#allocation3], 1
    %1926 = vsyncpa %s1925, 1
    %1927 = vsyncpa [#allocation6], 1
    %1928 = vsyncpa [#allocation9], 1
    %1929 = vsyncpa [#allocation4], 1
    %s1930 = scalar_lea.sflag [#allocation4], 1
    %1931 = vsyncpa %s1930, 1

</llo_original>
